<compile_context>
chip_gen: v6e
topology: v6e:2x2x1
jax: 0.10.0
libtpu: 0.0.40
codegen_flags: <defaults>
</compile_context>

<pallas_src>
import functools
import math

import jax
import jax.numpy as jnp
from jax.experimental import pallas as pl
from jax.experimental.pallas import tpu as pltpu


def _round_up(x, m):
    return ((x + m - 1) // m) * m


# --------- Pass 1: per-node MLP chain (hid + msg), purely row-parallel ----------

def _node_mlp_kernel(feat_ref, w_hid_ref, b_hid_ref,
                     w_m1_ref, b_m1_ref, w_m2_ref, b_m2_ref,
                     hid_ref, msg_ref):
    feat = feat_ref[...]
    hid = jnp.maximum(
        jnp.dot(feat, w_hid_ref[...], preferred_element_type=jnp.float32)
        + b_hid_ref[...], 0.0)
    t = jnp.maximum(
        jnp.dot(hid, w_m1_ref[...], preferred_element_type=jnp.float32)
        + b_m1_ref[...], 0.0)
    msg = jnp.maximum(
        jnp.dot(t, w_m2_ref[...], preferred_element_type=jnp.float32)
        + b_m2_ref[...], 0.0)
    hid_ref[...] = hid.astype(hid_ref.dtype)
    msg_ref[...] = msg.astype(msg_ref.dtype)


# --------- Pass 2: tiled aggregation f = adj @ msg with fused agg-MLP epilogue ---

def _aggregate_kernel(adj_ref, msg_ref, hid_ref,
                      w_a1_ref, b_a1_ref, w_a2_ref, b_a2_ref,
                      out_ref, acc_ref):
    k = pl.program_id(1)

    @pl.when(k == 0)
    def _():
        acc_ref[...] = jnp.zeros_like(acc_ref)

    # adj lives in HBM as bf16 (0/1 exact); widen in-register, accumulate in f32.
    acc_ref[...] += jnp.dot(adj_ref[...].astype(jnp.float32), msg_ref[...],
                            preferred_element_type=jnp.float32)

    @pl.when(k == pl.num_programs(1) - 1)
    def _():
        f = acc_ref[...]
        t = jnp.maximum(
            jnp.dot(f, w_a1_ref[...], preferred_element_type=jnp.float32)
            + b_a1_ref[...], 0.0)
        y = jnp.maximum(
            jnp.dot(t, w_a2_ref[...], preferred_element_type=jnp.float32)
            + b_a2_ref[...], 0.0)
        out_ref[...] = (y + hid_ref[...]).astype(out_ref.dtype)


@functools.partial(jax.jit, static_argnames=("tm", "tk"))
def gcn_layer_forward(feature, adj, params, *, tm=128, tk=128):
    """Tiled, pipelined GCNLayer forward. Pads node and feature dims, runs two
    pallas_calls, and slices the result back to the original shape."""
    n, in_feats = feature.shape
    out_feats = params["w_hid"].shape[1]
    hid_feats = params["w_m1"].shape[1]

    in_p = _round_up(in_feats, 128)
    hid_p = _round_up(hid_feats, 128)
    out_p = _round_up(out_feats, 128)
    n_p = _round_up(n, math.lcm(tm, tk))

    pad2 = lambda x, r, c: jnp.pad(x, ((0, r - x.shape[0]), (0, c - x.shape[1])))

    feat_p = pad2(feature.astype(jnp.float32), n_p, in_p)
    adj_p = pad2(adj, n_p, n_p).astype(jnp.bfloat16)   # 0/1 -> exact in bf16

    w_hid = pad2(params["w_hid"], in_p, out_p);  b_hid = pad2(params["b_hid"], 1, out_p)
    w_m1 = pad2(params["w_m1"], out_p, hid_p);   b_m1 = pad2(params["b_m1"], 1, hid_p)
    w_m2 = pad2(params["w_m2"], hid_p, out_p);   b_m2 = pad2(params["b_m2"], 1, out_p)
    w_a1 = pad2(params["w_a1"], out_p, hid_p);   b_a1 = pad2(params["b_a1"], 1, hid_p)
    w_a2 = pad2(params["w_a2"], hid_p, out_p);   b_a2 = pad2(params["b_a2"], 1, out_p)

    # Constant index_maps: weights/biases stay VMEM-resident across grid steps.
    const1 = lambda shape: pl.BlockSpec(shape, lambda i: (0, 0))
    const2 = lambda shape: pl.BlockSpec(shape, lambda i, k: (0, 0))

    # -------------------- pass 1: hid / msg for every node tile -----------------
    flops1 = 2 * n_p * (in_p * out_p + out_p * hid_p + hid_p * out_p)
    bytes1 = 4 * (n_p * in_p + 2 * n_p * out_p
                  + in_p * out_p + out_p * hid_p + hid_p * out_p
                  + 2 * out_p + hid_p)
    hid_full, msg = pl.pallas_call(
        _node_mlp_kernel,
        out_shape=(jax.ShapeDtypeStruct((n_p, out_p), jnp.float32),
                   jax.ShapeDtypeStruct((n_p, out_p), jnp.float32)),
        grid_spec=pltpu.PrefetchScalarGridSpec(
            num_scalar_prefetch=0,
            grid=(n_p // tm,),
            in_specs=[
                pl.BlockSpec((tm, in_p), lambda i: (i, 0)),
                const1((in_p, out_p)), const1((1, out_p)),
                const1((out_p, hid_p)), const1((1, hid_p)),
                const1((hid_p, out_p)), const1((1, out_p)),
            ],
            out_specs=[
                pl.BlockSpec((tm, out_p), lambda i: (i, 0)),
                pl.BlockSpec((tm, out_p), lambda i: (i, 0)),
            ],
        ),
        compiler_params=pltpu.CompilerParams(
            dimension_semantics=("parallel",)),
        cost_estimate=pl.CostEstimate(flops=flops1, transcendentals=0,
                                      bytes_accessed=bytes1),
    )(feat_p, w_hid, b_hid, w_m1, b_m1, w_m2, b_m2)

    # ---- pass 2: tiled adj @ msg reduction + fused agg-MLP / residual epilogue --
    flops2 = 2 * n_p * n_p * out_p + 2 * n_p * (out_p * hid_p + hid_p * out_p)
    bytes2 = (2 * n_p * n_p                     # adj (bf16)
              + 4 * 3 * n_p * out_p             # msg + hid + out (f32)
              + 4 * (out_p * hid_p + hid_p * out_p + hid_p + out_p))
    out_padded = pl.pallas_call(
        _aggregate_kernel,
        out_shape=jax.ShapeDtypeStruct((n_p, out_p), jnp.float32),
        grid_spec=pltpu.PrefetchScalarGridSpec(
            num_scalar_prefetch=0,
            grid=(n_p // tm, n_p // tk),
            in_specs=[
                pl.BlockSpec((tm, tk), lambda i, k: (i, k)),     # adj tile (dst, src)
                pl.BlockSpec((tk, out_p), lambda i, k: (k, 0)),  # msg src tile
                pl.BlockSpec((tm, out_p), lambda i, k: (i, 0)),  # hid residual tile
                const2((out_p, hid_p)), const2((1, hid_p)),
                const2((hid_p, out_p)), const2((1, out_p)),
            ],
            out_specs=pl.BlockSpec((tm, out_p), lambda i, k: (i, 0)),
            scratch_shapes=[pltpu.VMEM((tm, out_p), jnp.float32)],
        ),
        compiler_params=pltpu.CompilerParams(
            dimension_semantics=("parallel", "arbitrary")),
        cost_estimate=pl.CostEstimate(flops=flops2, transcendentals=0,
                                      bytes_accessed=bytes2),
    )(adj_p, msg, hid_full, w_a1, b_a1, w_a2, b_a2)

    return out_padded[:n, :out_feats]


def init_params(key, in_feats, hid_feats, out_feats):
    """Deterministic parameter init mirroring nn.Linear (uniform +-1/sqrt(fan_in)).
    Weights are stored as [in, out] (transposed vs PyTorch's [out, in])."""
    def linear(key, fan_in, fan_out):
        kw, kb = jax.random.split(key)
        bound = 1.0 / jnp.sqrt(fan_in)
        w = jax.random.uniform(kw, (fan_in, fan_out), jnp.float32, -bound, bound)
        b = jax.random.uniform(kb, (1, fan_out), jnp.float32, -bound, bound)
        return w, b

    keys = jax.random.split(key, 5)
    w_hid, b_hid = linear(keys[0], in_feats, out_feats)
    w_m1, b_m1 = linear(keys[1], out_feats, hid_feats)
    w_m2, b_m2 = linear(keys[2], hid_feats, out_feats)
    w_a1, b_a1 = linear(keys[3], out_feats, hid_feats)
    w_a2, b_a2 = linear(keys[4], hid_feats, out_feats)
    return dict(w_hid=w_hid, b_hid=b_hid,
                w_m1=w_m1, b_m1=b_m1, w_m2=w_m2, b_m2=b_m2,
                w_a1=w_a1, b_a1=b_a1, w_a2=w_a2, b_a2=b_a2)


def gcn_layer_reference(feature, adj, p):
    """Pure-JAX reference for correctness checking."""
    relu = lambda x: jnp.maximum(x, 0.0)
    hid = relu(feature @ p["w_hid"] + p["b_hid"])
    msg = relu(relu(hid @ p["w_m1"] + p["b_m1"]) @ p["w_m2"] + p["b_m2"])
    f = adj @ msg
    return relu(relu(f @ p["w_a1"] + p["b_a1"]) @ p["w_a2"] + p["b_a2"]) + hid


if __name__ == "__main__":
    # Small synthetic graph: N nodes, dense adjacency (adj[dst, src] = 1 if edge src->dst).
    N, IN_FEATS, HID_FEATS, OUT_FEATS = 256, 16, 32, 16

    key = jax.random.PRNGKey(0)
    k_feat, k_adj, k_params = jax.random.split(key, 3)

    feature = jax.random.normal(k_feat, (N, IN_FEATS), jnp.float32)
    adj = jax.random.bernoulli(k_adj, p=0.1, shape=(N, N)).astype(jnp.float32)
    params = init_params(k_params, IN_FEATS, HID_FEATS, OUT_FEATS)

    out = gcn_layer_forward(feature, adj, params)
    out = jax.block_until_ready(out)

    ref = gcn_layer_reference(feature, adj, params)
    assert out.shape == (N, OUT_FEATS)
    assert jnp.allclose(out, ref, atol=1e-4, rtol=1e-4), "Pallas kernel mismatch vs reference"

    print("KERNEL_OK")
</pallas_src>

<mosaic_0001>
module attributes {stable_mosaic.version = 11 : i64} {
  func.func @_node_mlp_kernel(%arg0: i32, %arg1: memref<128x128xf32, #tpu.memory_space<vmem>>, %arg2: memref<128x128xf32, #tpu.memory_space<vmem>>, %arg3: memref<1x128xf32, #tpu.memory_space<vmem>>, %arg4: memref<128x128xf32, #tpu.memory_space<vmem>>, %arg5: memref<1x128xf32, #tpu.memory_space<vmem>>, %arg6: memref<128x128xf32, #tpu.memory_space<vmem>>, %arg7: memref<1x128xf32, #tpu.memory_space<vmem>>, %arg8: memref<128x128xf32, #tpu.memory_space<vmem>>, %arg9: memref<128x128xf32, #tpu.memory_space<vmem>>) attributes {dimension_semantics = [#tpu.dimension_semantics<parallel>], iteration_bounds = array<i64: 2>, scalar_prefetch = 0 : i64, scratch_operands = 0 : i64, tpu.core_type = #tpu.core_type<tc>, window_params = [{transform_indices = @transform_0, window_bounds = array<i64: 128, 128>}, {pipeline_mode = #tpu.pipeline_mode<synchronous>, transform_indices = @transform_1, window_bounds = array<i64: 128, 128>}, {pipeline_mode = #tpu.pipeline_mode<synchronous>, transform_indices = @transform_2, window_bounds = array<i64: 1, 128>}, {pipeline_mode = #tpu.pipeline_mode<synchronous>, transform_indices = @transform_3, window_bounds = array<i64: 128, 128>}, {pipeline_mode = #tpu.pipeline_mode<synchronous>, transform_indices = @transform_4, window_bounds = array<i64: 1, 128>}, {pipeline_mode = #tpu.pipeline_mode<synchronous>, transform_indices = @transform_5, window_bounds = array<i64: 128, 128>}, {pipeline_mode = #tpu.pipeline_mode<synchronous>, transform_indices = @transform_6, window_bounds = array<i64: 1, 128>}, {transform_indices = @transform_7, window_bounds = array<i64: 128, 128>}, {transform_indices = @transform_8, window_bounds = array<i64: 128, 128>}]} {
    %c0 = arith.constant 0 : index
    %c0_0 = arith.constant 0 : index
    %0 = vector.load %arg1[%c0, %c0_0] : memref<128x128xf32, #tpu.memory_space<vmem>>, vector<128x128xf32>
    %c0_1 = arith.constant 0 : index
    %c0_2 = arith.constant 0 : index
    %1 = vector.load %arg2[%c0_1, %c0_2] : memref<128x128xf32, #tpu.memory_space<vmem>>, vector<128x128xf32>
    %cst = arith.constant dense<0.000000e+00> : vector<128x128xf32>
    %2 = tpu.matmul %0, %1, %cst {dimension_numbers = #tpu.dot_dimension_numbers<[1], [0], [0], [1], [0, 0, 1, 1], [], []>} : vector<128x128xf32>, vector<128x128xf32>, vector<128x128xf32> -> vector<128x128xf32>
    %c0_3 = arith.constant 0 : index
    %c0_4 = arith.constant 0 : index
    %3 = vector.load %arg3[%c0_3, %c0_4] : memref<1x128xf32, #tpu.memory_space<vmem>>, vector<1x128xf32>
    %4 = vector.broadcast %3 : vector<1x128xf32> to vector<128x128xf32>
    %5 = arith.addf %2, %4 : vector<128x128xf32>
    %cst_5 = arith.constant 0.000000e+00 : f32
    %6 = vector.broadcast %cst_5 : f32 to vector<128x128xf32>
    %7 = arith.maximumf %5, %6 : vector<128x128xf32>
    %c0_6 = arith.constant 0 : index
    %c0_7 = arith.constant 0 : index
    %8 = vector.load %arg4[%c0_6, %c0_7] : memref<128x128xf32, #tpu.memory_space<vmem>>, vector<128x128xf32>
    %cst_8 = arith.constant dense<0.000000e+00> : vector<128x128xf32>
    %9 = tpu.matmul %7, %8, %cst_8 {dimension_numbers = #tpu.dot_dimension_numbers<[1], [0], [0], [1], [0, 0, 1, 1], [], []>} : vector<128x128xf32>, vector<128x128xf32>, vector<128x128xf32> -> vector<128x128xf32>
    %c0_9 = arith.constant 0 : index
    %c0_10 = arith.constant 0 : index
    %10 = vector.load %arg5[%c0_9, %c0_10] : memref<1x128xf32, #tpu.memory_space<vmem>>, vector<1x128xf32>
    %11 = vector.broadcast %10 : vector<1x128xf32> to vector<128x128xf32>
    %12 = arith.addf %9, %11 : vector<128x128xf32>
    %cst_11 = arith.constant 0.000000e+00 : f32
    %13 = vector.broadcast %cst_11 : f32 to vector<128x128xf32>
    %14 = arith.maximumf %12, %13 : vector<128x128xf32>
    %c0_12 = arith.constant 0 : index
    %c0_13 = arith.constant 0 : index
    %15 = vector.load %arg6[%c0_12, %c0_13] : memref<128x128xf32, #tpu.memory_space<vmem>>, vector<128x128xf32>
    %cst_14 = arith.constant dense<0.000000e+00> : vector<128x128xf32>
    %16 = tpu.matmul %14, %15, %cst_14 {dimension_numbers = #tpu.dot_dimension_numbers<[1], [0], [0], [1], [0, 0, 1, 1], [], []>} : vector<128x128xf32>, vector<128x128xf32>, vector<128x128xf32> -> vector<128x128xf32>
    %c0_15 = arith.constant 0 : index
    %c0_16 = arith.constant 0 : index
    %17 = vector.load %arg7[%c0_15, %c0_16] : memref<1x128xf32, #tpu.memory_space<vmem>>, vector<1x128xf32>
    %18 = vector.broadcast %17 : vector<1x128xf32> to vector<128x128xf32>
    %19 = arith.addf %16, %18 : vector<128x128xf32>
    %cst_17 = arith.constant 0.000000e+00 : f32
    %20 = vector.broadcast %cst_17 : f32 to vector<128x128xf32>
    %21 = arith.maximumf %19, %20 : vector<128x128xf32>
    %c0_18 = arith.constant 0 : index
    %c0_19 = arith.constant 0 : index
    %22 = vector.load %arg8[%c0_18, %c0_19] : memref<128x128xf32, #tpu.memory_space<vmem>>, vector<128x128xf32>
    tpu.vector_store %arg8[%c0_18, %c0_19], %7 {strides = array<i32>} : memref<128x128xf32, #tpu.memory_space<vmem>>, vector<128x128xf32>,
    %c0_20 = arith.constant 0 : index
    %c0_21 = arith.constant 0 : index
    %23 = vector.load %arg9[%c0_20, %c0_21] : memref<128x128xf32, #tpu.memory_space<vmem>>, vector<128x128xf32>
    tpu.vector_store %arg9[%c0_20, %c0_21], %21 {strides = array<i32>} : memref<128x128xf32, #tpu.memory_space<vmem>>, vector<128x128xf32>,
    return
  }
  func.func @transform_0(%arg0: i32) -> (i32, i32) {
    %c0_i32 = arith.constant 0 : i32
    %c0_i32_0 = arith.constant 0 : i32
    return %arg0, %c0_i32 : i32, i32
  }
  func.func @transform_1(%arg0: i32) -> (i32, i32) {
    %c0_i32 = arith.constant 0 : i32
    %c0_i32_0 = arith.constant 0 : i32
    %c0_i32_1 = arith.constant 0 : i32
    return %c0_i32, %c0_i32_0 : i32, i32
  }
  func.func @transform_2(%arg0: i32) -> (i32, i32) {
    %c0_i32 = arith.constant 0 : i32
    %c0_i32_0 = arith.constant 0 : i32
    %c0_i32_1 = arith.constant 0 : i32
    return %c0_i32, %c0_i32_0 : i32, i32
  }
  func.func @transform_3(%arg0: i32) -> (i32, i32) {
    %c0_i32 = arith.constant 0 : i32
    %c0_i32_0 = arith.constant 0 : i32
    %c0_i32_1 = arith.constant 0 : i32
    return %c0_i32, %c0_i32_0 : i32, i32
  }
  func.func @transform_4(%arg0: i32) -> (i32, i32) {
    %c0_i32 = arith.constant 0 : i32
    %c0_i32_0 = arith.constant 0 : i32
    %c0_i32_1 = arith.constant 0 : i32
    return %c0_i32, %c0_i32_0 : i32, i32
  }
  func.func @transform_5(%arg0: i32) -> (i32, i32) {
    %c0_i32 = arith.constant 0 : i32
    %c0_i32_0 = arith.constant 0 : i32
    %c0_i32_1 = arith.constant 0 : i32
    return %c0_i32, %c0_i32_0 : i32, i32
  }
  func.func @transform_6(%arg0: i32) -> (i32, i32) {
    %c0_i32 = arith.constant 0 : i32
    %c0_i32_0 = arith.constant 0 : i32
    %c0_i32_1 = arith.constant 0 : i32
    return %c0_i32, %c0_i32_0 : i32, i32
  }
  func.func @transform_7(%arg0: i32) -> (i32, i32) {
    %c0_i32 = arith.constant 0 : i32
    %c0_i32_0 = arith.constant 0 : i32
    return %arg0, %c0_i32 : i32, i32
  }
  func.func @transform_8(%arg0: i32) -> (i32, i32) {
    %c0_i32 = arith.constant 0 : i32
    %c0_i32_0 = arith.constant 0 : i32
    return %arg0, %c0_i32 : i32, i32
  }
}

module attributes {stable_mosaic.version = 11 : i64} {
  func.func @_aggregate_kernel(%arg0: i32, %arg1: i32, %arg2: memref<128x128xbf16, #tpu.memory_space<vmem>>, %arg3: memref<128x128xf32, #tpu.memory_space<vmem>>, %arg4: memref<128x128xf32, #tpu.memory_space<vmem>>, %arg5: memref<128x128xf32, #tpu.memory_space<vmem>>, %arg6: memref<1x128xf32, #tpu.memory_space<vmem>>, %arg7: memref<128x128xf32, #tpu.memory_space<vmem>>, %arg8: memref<1x128xf32, #tpu.memory_space<vmem>>, %arg9: memref<128x128xf32, #tpu.memory_space<vmem>>, %arg10: memref<128x128xf32, #tpu.memory_space<vmem>>) attributes {dimension_semantics = [#tpu.dimension_semantics<parallel>, #tpu.dimension_semantics<arbitrary>], iteration_bounds = array<i64: 2, 2>, scalar_prefetch = 0 : i64, scratch_operands = 1 : i64, tpu.core_type = #tpu.core_type<tc>, window_params = [{transform_indices = @transform_0, window_bounds = array<i64: 128, 128>}, {transform_indices = @transform_1, window_bounds = array<i64: 128, 128>}, {transform_indices = @transform_2, window_bounds = array<i64: 128, 128>}, {pipeline_mode = #tpu.pipeline_mode<synchronous>, transform_indices = @transform_3, window_bounds = array<i64: 128, 128>}, {pipeline_mode = #tpu.pipeline_mode<synchronous>, transform_indices = @transform_4, window_bounds = array<i64: 1, 128>}, {pipeline_mode = #tpu.pipeline_mode<synchronous>, transform_indices = @transform_5, window_bounds = array<i64: 128, 128>}, {pipeline_mode = #tpu.pipeline_mode<synchronous>, transform_indices = @transform_6, window_bounds = array<i64: 1, 128>}, {transform_indices = @transform_7, window_bounds = array<i64: 128, 128>}]} {
    %c0_i32 = arith.constant 0 : i32
    %0 = arith.cmpi eq, %arg1, %c0_i32 : i32
    %1 = arith.extui %0 : i1 to i32
    %c0_i32_0 = arith.constant 0 : i32
    %2 = arith.cmpi ne, %1, %c0_i32_0 : i32
    scf.if %2 {
      %cst_9 = arith.constant 0.000000e+00 : f32
      %13 = vector.broadcast %cst_9 : f32 to vector<128x128xf32>
      %c0_10 = arith.constant 0 : index
      %c0_11 = arith.constant 0 : index
      %14 = vector.load %arg10[%c0_10, %c0_11] : memref<128x128xf32, #tpu.memory_space<vmem>>, vector<128x128xf32>
      tpu.vector_store %arg10[%c0_10, %c0_11], %13 {strides = array<i32>} : memref<128x128xf32, #tpu.memory_space<vmem>>, vector<128x128xf32>,
    } else {
    }
    %c0 = arith.constant 0 : index
    %c0_1 = arith.constant 0 : index
    %3 = vector.load %arg10[%c0, %c0_1] : memref<128x128xf32, #tpu.memory_space<vmem>>, vector<128x128xf32>
    %c0_2 = arith.constant 0 : index
    %c0_3 = arith.constant 0 : index
    %4 = vector.load %arg2[%c0_2, %c0_3] : memref<128x128xbf16, #tpu.memory_space<vmem>>, vector<128x128xbf16>
    %5 = arith.extf %4 : vector<128x128xbf16> to vector<128x128xf32>
    %c0_4 = arith.constant 0 : index
    %c0_5 = arith.constant 0 : index
    %6 = vector.load %arg3[%c0_4, %c0_5] : memref<128x128xf32, #tpu.memory_space<vmem>>, vector<128x128xf32>
    %cst = arith.constant dense<0.000000e+00> : vector<128x128xf32>
    %7 = tpu.matmul %5, %6, %cst {dimension_numbers = #tpu.dot_dimension_numbers<[1], [0], [0], [1], [0, 0, 1, 1], [], []>} : vector<128x128xf32>, vector<128x128xf32>, vector<128x128xf32> -> vector<128x128xf32>
    %8 = arith.addf %3, %7 : vector<128x128xf32>
    %c0_6 = arith.constant 0 : index
    %c0_7 = arith.constant 0 : index
    %9 = vector.load %arg10[%c0_6, %c0_7] : memref<128x128xf32, #tpu.memory_space<vmem>>, vector<128x128xf32>
    tpu.vector_store %arg10[%c0_6, %c0_7], %8 {strides = array<i32>} : memref<128x128xf32, #tpu.memory_space<vmem>>, vector<128x128xf32>,
    %c1_i32 = arith.constant 1 : i32
    %10 = arith.cmpi eq, %arg1, %c1_i32 : i32
    %11 = arith.extui %10 : i1 to i32
    %c0_i32_8 = arith.constant 0 : i32
    %12 = arith.cmpi ne, %11, %c0_i32_8 : i32
    scf.if %12 {
      %c0_9 = arith.constant 0 : index
      %c0_10 = arith.constant 0 : index
      %13 = vector.load %arg10[%c0_9, %c0_10] : memref<128x128xf32, #tpu.memory_space<vmem>>, vector<128x128xf32>
      %c0_11 = arith.constant 0 : index
      %c0_12 = arith.constant 0 : index
      %14 = vector.load %arg5[%c0_11, %c0_12] : memref<128x128xf32, #tpu.memory_space<vmem>>, vector<128x128xf32>
      %cst_13 = arith.constant dense<0.000000e+00> : vector<128x128xf32>
      %15 = tpu.matmul %13, %14, %cst_13 {dimension_numbers = #tpu.dot_dimension_numbers<[1], [0], [0], [1], [0, 0, 1, 1], [], []>} : vector<128x128xf32>, vector<128x128xf32>, vector<128x128xf32> -> vector<128x128xf32>
      %c0_14 = arith.constant 0 : index
      %c0_15 = arith.constant 0 : index
      %16 = vector.load %arg6[%c0_14, %c0_15] : memref<1x128xf32, #tpu.memory_space<vmem>>, vector<1x128xf32>
      %17 = vector.broadcast %16 : vector<1x128xf32> to vector<128x128xf32>
      %18 = arith.addf %15, %17 : vector<128x128xf32>
      %cst_16 = arith.constant 0.000000e+00 : f32
      %19 = vector.broadcast %cst_16 : f32 to vector<128x128xf32>
      %20 = arith.maximumf %18, %19 : vector<128x128xf32>
      %c0_17 = arith.constant 0 : index
      %c0_18 = arith.constant 0 : index
      %21 = vector.load %arg7[%c0_17, %c0_18] : memref<128x128xf32, #tpu.memory_space<vmem>>, vector<128x128xf32>
      %cst_19 = arith.constant dense<0.000000e+00> : vector<128x128xf32>
      %22 = tpu.matmul %20, %21, %cst_19 {dimension_numbers = #tpu.dot_dimension_numbers<[1], [0], [0], [1], [0, 0, 1, 1], [], []>} : vector<128x128xf32>, vector<128x128xf32>, vector<128x128xf32> -> vector<128x128xf32>
      %c0_20 = arith.constant 0 : index
      %c0_21 = arith.constant 0 : index
      %23 = vector.load %arg8[%c0_20, %c0_21] : memref<1x128xf32, #tpu.memory_space<vmem>>, vector<1x128xf32>
      %24 = vector.broadcast %23 : vector<1x128xf32> to vector<128x128xf32>
      %25 = arith.addf %22, %24 : vector<128x128xf32>
      %cst_22 = arith.constant 0.000000e+00 : f32
      %26 = vector.broadcast %cst_22 : f32 to vector<128x128xf32>
      %27 = arith.maximumf %25, %26 : vector<128x128xf32>
      %c0_23 = arith.constant 0 : index
      %c0_24 = arith.constant 0 : index
      %28 = vector.load %arg4[%c0_23, %c0_24] : memref<128x128xf32, #tpu.memory_space<vmem>>, vector<128x128xf32>
      %29 = arith.addf %27, %28 : vector<128x128xf32>
      %c0_25 = arith.constant 0 : index
      %c0_26 = arith.constant 0 : index
      %30 = vector.load %arg9[%c0_25, %c0_26] : memref<128x128xf32, #tpu.memory_space<vmem>>, vector<128x128xf32>
      tpu.vector_store %arg9[%c0_25, %c0_26], %29 {strides = array<i32>} : memref<128x128xf32, #tpu.memory_space<vmem>>, vector<128x128xf32>,
    } else {
    }
    return
  }
  func.func @transform_0(%arg0: i32, %arg1: i32) -> (i32, i32) {
    %c0_i32 = arith.constant 0 : i32
    return %arg0, %arg1 : i32, i32
  }
  func.func @transform_1(%arg0: i32, %arg1: i32) -> (i32, i32) {
    %c0_i32 = arith.constant 0 : i32
    %c0_i32_0 = arith.constant 0 : i32
    return %arg1, %c0_i32 : i32, i32
  }
  func.func @transform_2(%arg0: i32, %arg1: i32) -> (i32, i32) {
    %c0_i32 = arith.constant 0 : i32
    %c0_i32_0 = arith.constant 0 : i32
    return %arg0, %c0_i32 : i32, i32
  }
  func.func @transform_3(%arg0: i32, %arg1: i32) -> (i32, i32) {
    %c0_i32 = arith.constant 0 : i32
    %c0_i32_0 = arith.constant 0 : i32
    %c0_i32_1 = arith.constant 0 : i32
    return %c0_i32, %c0_i32_0 : i32, i32
  }
  func.func @transform_4(%arg0: i32, %arg1: i32) -> (i32, i32) {
    %c0_i32 = arith.constant 0 : i32
    %c0_i32_0 = arith.constant 0 : i32
    %c0_i32_1 = arith.constant 0 : i32
    return %c0_i32, %c0_i32_0 : i32, i32
  }
  func.func @transform_5(%arg0: i32, %arg1: i32) -> (i32, i32) {
    %c0_i32 = arith.constant 0 : i32
    %c0_i32_0 = arith.constant 0 : i32
    %c0_i32_1 = arith.constant 0 : i32
    return %c0_i32, %c0_i32_0 : i32, i32
  }
  func.func @transform_6(%arg0: i32, %arg1: i32) -> (i32, i32) {
    %c0_i32 = arith.constant 0 : i32
    %c0_i32_0 = arith.constant 0 : i32
    %c0_i32_1 = arith.constant 0 : i32
    return %c0_i32, %c0_i32_0 : i32, i32
  }
  func.func @transform_7(%arg0: i32, %arg1: i32) -> (i32, i32) {
    %c0_i32 = arith.constant 0 : i32
    %c0_i32_0 = arith.constant 0 : i32
    return %arg0, %c0_i32 : i32, i32
  }
}

</mosaic_0001>

<llo_original>
// kernel: gcn_layer_forward.2
$region0: #{gcn_layer_forward.2}
  #allocation0 [shape = 'u32[]', space=smem, size = 0x4, offset = 0x4, fixed_abs, tag = 'smem constant byte address 0x4 - core index']
  #allocation1 [shape = 'u32[144,128]{1,0:T(1,128)}', space=vmem, size = 0x12000, scoped, tag = 'internal scratch']
  %s0 = inlined_call_operand.vmem [shape: f32[256,128], index: 0, kind: input, shape index: {}]
  %s1 = inlined_call_operand.vmem [shape: f32[128,128], index: 1, kind: input, shape index: {}]
  %s2 = inlined_call_operand.vmem [shape: f32[1,128], index: 2, kind: input, shape index: {}]
  %s3 = inlined_call_operand.vmem [shape: f32[128,128], index: 3, kind: input, shape index: {}]
  %s4 = inlined_call_operand.vmem [shape: f32[1,128], index: 4, kind: input, shape index: {}]
  %s5 = inlined_call_operand.vmem [shape: f32[128,128], index: 5, kind: input, shape index: {}]
  %s6 = inlined_call_operand.vmem [shape: f32[1,128], index: 6, kind: input, shape index: {}]
  %s7 = inlined_call_operand.vmem [shape: f32[256,128], index: 7, kind: output, shape index: {0}]
  %s8 = inlined_call_operand.vmem [shape: f32[256,128], index: 8, kind: output, shape index: {1}]
  %9 = xla_tuple %s7, %s8
  %s10 = sld [smem:[#allocation0]]
  $region69: #{gcn_layer_forward.2} parent=0
    _
  %s12 = ssub.s32 1, %s10
  %s13 = scalar_select 0, %s12, %s10
  loop: start=0, step=1, limit=4
  $region2: #{gcn_layer_forward.2} parent=0 // loop_pre_header
    _
  $region3: #{gcn_layer_forward.2} parent=0 // loop_header
    %s15 = sphi 0, %s19
    %p16 = scmp.ge.s32.totalorder %s15, 4
    %s25 = sphi 0, %s27
    %s28 = sphi 0, %s25
    %s29 = sphi 0, %s28
    %s45 = sphi 0, %s29
    %s49 = sphi 0, %s49
    %s51 = sphi 0, %s49
    %s52 = sphi 0, %s51
    %s66 = sphi 0, %s52
    %s70 = sphi 0, %s70
    %s72 = sphi 0, %s70
    %s73 = sphi 0, %s72
    %s87 = sphi 0, %s73
    %s91 = sphi 0, %s91
    %s93 = sphi 0, %s91
    %s94 = sphi 0, %s93
    %s108 = sphi 0, %s94
    %s112 = sphi 0, %s112
    %s114 = sphi 0, %s112
    %s115 = sphi 0, %s114
    %s129 = sphi 0, %s115
    %s133 = sphi 0, %s133
    %s135 = sphi 0, %s133
    %s136 = sphi 0, %s135
    %s150 = sphi 0, %s136
    %s154 = sphi 0, %s154
    %s156 = sphi 0, %s154
    %s157 = sphi 0, %s156
    %s171 = sphi 0, %s157
    %s177 = sphi 0, %s179
    %s180 = sphi 0, %s177
    %s181 = sphi 0, %s180
    %s197 = sphi 0, %s181
    %s203 = sphi 0, %s205
    %s206 = sphi 0, %s203
    %s207 = sphi 0, %s206
    %s223 = sphi 0, %s207
  $region4: #{gcn_layer_forward.2} parent=0 // loop_header_branch
    %18 = sbr.rel (%p16) target = $region8
  $region5: #{gcn_layer_forward.2} parent=0 // loop_body
    %s20 = ssub.s32 %s15, 1
    %s21 = ssub.s32 %s15, 2
    %s22 = sadd.s32 %s15, 1
    %s23 = ssub.s32 %s15, %s22
    %p24 = scmp.eq.s32.totalorder %s23, 0
    %s26 = sadd.s32 %s25, 1
    %s27 = scalar_select %p24, %s25, %s26
    %p30 = pneg %p24
    %p31 = scmp.eq.s32.totalorder %s15, 1
    %p32 = por %p30, %p31
    %p33 = scmp.ne.s32.totalorder %s25, %s28
    %p34 = scmp.eq.s32.totalorder %s15, 0
    %p35 = por %p33, %p34
    %p36 = scmp.ne.s32.totalorder %s25, %s28
    %p37 = scmp.eq.s32.totalorder %s20, 1
    %p38 = por %p36, %p37
    %p39 = scmp.ne.s32.totalorder %s28, %s29
    %p40 = scmp.eq.s32.totalorder %s20, 0
    %p41 = por %p39, %p40
    %p42 = scmp.ne.s32.totalorder %s28, %s29
    %p43 = scmp.eq.s32.totalorder %s21, 1
    %p44 = por %p42, %p43
    %p46 = scmp.ne.s32.totalorder %s29, %s45
    %p47 = scmp.eq.s32.totalorder %s21, 0
    %p48 = por %p46, %p47
    %s50 = sadd.s32 %s49, 1
    %p53 = scmp.eq.s32.totalorder %s15, 1
    %p54 = scmp.ne.s32.totalorder %s49, %s51
    %p55 = scmp.eq.s32.totalorder %s15, 0
    %p56 = por %p54, %p55
    %p57 = scmp.ne.s32.totalorder %s49, %s51
    %p58 = scmp.eq.s32.totalorder %s20, 1
    %p59 = por %p57, %p58
    %p60 = scmp.ne.s32.totalorder %s51, %s52
    %p61 = scmp.eq.s32.totalorder %s20, 0
    %p62 = por %p60, %p61
    %p63 = scmp.ne.s32.totalorder %s51, %s52
    %p64 = scmp.eq.s32.totalorder %s21, 1
    %p65 = por %p63, %p64
    %p67 = scmp.ne.s32.totalorder %s52, %s66
    %p68 = scmp.eq.s32.totalorder %s21, 0
    %p69 = por %p67, %p68
    %s71 = sadd.s32 %s70, 1
    %p74 = scmp.eq.s32.totalorder %s15, 1
    %p75 = scmp.ne.s32.totalorder %s70, %s72
    %p76 = scmp.eq.s32.totalorder %s15, 0
    %p77 = por %p75, %p76
    %p78 = scmp.ne.s32.totalorder %s70, %s72
    %p79 = scmp.eq.s32.totalorder %s20, 1
    %p80 = por %p78, %p79
    %p81 = scmp.ne.s32.totalorder %s72, %s73
    %p82 = scmp.eq.s32.totalorder %s20, 0
    %p83 = por %p81, %p82
    %p84 = scmp.ne.s32.totalorder %s72, %s73
    %p85 = scmp.eq.s32.totalorder %s21, 1
    %p86 = por %p84, %p85
    %p88 = scmp.ne.s32.totalorder %s73, %s87
    %p89 = scmp.eq.s32.totalorder %s21, 0
    %p90 = por %p88, %p89
    %s92 = sadd.s32 %s91, 1
    %p95 = scmp.eq.s32.totalorder %s15, 1
    %p96 = scmp.ne.s32.totalorder %s91, %s93
    %p97 = scmp.eq.s32.totalorder %s15, 0
    %p98 = por %p96, %p97
    %p99 = scmp.ne.s32.totalorder %s91, %s93
    %p100 = scmp.eq.s32.totalorder %s20, 1
    %p101 = por %p99, %p100
    %p102 = scmp.ne.s32.totalorder %s93, %s94
    %p103 = scmp.eq.s32.totalorder %s20, 0
    %p104 = por %p102, %p103
    %p105 = scmp.ne.s32.totalorder %s93, %s94
    %p106 = scmp.eq.s32.totalorder %s21, 1
    %p107 = por %p105, %p106
    %p109 = scmp.ne.s32.totalorder %s94, %s108
    %p110 = scmp.eq.s32.totalorder %s21, 0
    %p111 = por %p109, %p110
    %s113 = sadd.s32 %s112, 1
    %p116 = scmp.eq.s32.totalorder %s15, 1
    %p117 = scmp.ne.s32.totalorder %s112, %s114
    %p118 = scmp.eq.s32.totalorder %s15, 0
    %p119 = por %p117, %p118
    %p120 = scmp.ne.s32.totalorder %s112, %s114
    %p121 = scmp.eq.s32.totalorder %s20, 1
    %p122 = por %p120, %p121
    %p123 = scmp.ne.s32.totalorder %s114, %s115
    %p124 = scmp.eq.s32.totalorder %s20, 0
    %p125 = por %p123, %p124
    %p126 = scmp.ne.s32.totalorder %s114, %s115
    %p127 = scmp.eq.s32.totalorder %s21, 1
    %p128 = por %p126, %p127
    %p130 = scmp.ne.s32.totalorder %s115, %s129
    %p131 = scmp.eq.s32.totalorder %s21, 0
    %p132 = por %p130, %p131
    %s134 = sadd.s32 %s133, 1
    %p137 = scmp.eq.s32.totalorder %s15, 1
    %p138 = scmp.ne.s32.totalorder %s133, %s135
    %p139 = scmp.eq.s32.totalorder %s15, 0
    %p140 = por %p138, %p139
    %p141 = scmp.ne.s32.totalorder %s133, %s135
    %p142 = scmp.eq.s32.totalorder %s20, 1
    %p143 = por %p141, %p142
    %p144 = scmp.ne.s32.totalorder %s135, %s136
    %p145 = scmp.eq.s32.totalorder %s20, 0
    %p146 = por %p144, %p145
    %p147 = scmp.ne.s32.totalorder %s135, %s136
    %p148 = scmp.eq.s32.totalorder %s21, 1
    %p149 = por %p147, %p148
    %p151 = scmp.ne.s32.totalorder %s136, %s150
    %p152 = scmp.eq.s32.totalorder %s21, 0
    %p153 = por %p151, %p152
    %s155 = sadd.s32 %s154, 1
    %p158 = scmp.eq.s32.totalorder %s15, 1
    %p159 = scmp.ne.s32.totalorder %s154, %s156
    %p160 = scmp.eq.s32.totalorder %s15, 0
    %p161 = por %p159, %p160
    %p162 = scmp.ne.s32.totalorder %s154, %s156
    %p163 = scmp.eq.s32.totalorder %s20, 1
    %p164 = por %p162, %p163
    %p165 = scmp.ne.s32.totalorder %s156, %s157
    %p166 = scmp.eq.s32.totalorder %s20, 0
    %p167 = por %p165, %p166
    %p168 = scmp.ne.s32.totalorder %s156, %s157
    %p169 = scmp.eq.s32.totalorder %s21, 1
    %p170 = por %p168, %p169
    %p172 = scmp.ne.s32.totalorder %s157, %s171
    %p173 = scmp.eq.s32.totalorder %s21, 0
    %p174 = por %p172, %p173
    %s175 = ssub.s32 %s15, %s22
    %p176 = scmp.eq.s32.totalorder %s175, 0
    %s178 = sadd.s32 %s177, 1
    %s179 = scalar_select %p176, %s177, %s178
    %p182 = pneg %p176
    %p183 = scmp.eq.s32.totalorder %s15, 1
    %p184 = por %p182, %p183
    %p185 = scmp.ne.s32.totalorder %s177, %s180
    %p186 = scmp.eq.s32.totalorder %s15, 0
    %p187 = por %p185, %p186
    %p188 = scmp.ne.s32.totalorder %s177, %s180
    %p189 = scmp.eq.s32.totalorder %s20, 1
    %p190 = por %p188, %p189
    %p191 = scmp.ne.s32.totalorder %s180, %s181
    %p192 = scmp.eq.s32.totalorder %s20, 0
    %p193 = por %p191, %p192
    %p194 = scmp.ne.s32.totalorder %s180, %s181
    %p195 = scmp.eq.s32.totalorder %s21, 1
    %p196 = por %p194, %p195
    %p198 = scmp.ne.s32.totalorder %s181, %s197
    %p199 = scmp.eq.s32.totalorder %s21, 0
    %p200 = por %p198, %p199
    %s201 = ssub.s32 %s15, %s22
    %p202 = scmp.eq.s32.totalorder %s201, 0
    %s204 = sadd.s32 %s203, 1
    %s205 = scalar_select %p202, %s203, %s204
    %p208 = pneg %p202
    %p209 = scmp.eq.s32.totalorder %s15, 1
    %p210 = por %p208, %p209
    %p211 = scmp.ne.s32.totalorder %s203, %s206
    %p212 = scmp.eq.s32.totalorder %s15, 0
    %p213 = por %p211, %p212
    %p214 = scmp.ne.s32.totalorder %s203, %s206
    %p215 = scmp.eq.s32.totalorder %s20, 1
    %p216 = por %p214, %p215
    %p217 = scmp.ne.s32.totalorder %s206, %s207
    %p218 = scmp.eq.s32.totalorder %s20, 0
    %p219 = por %p217, %p218
    %p220 = scmp.ne.s32.totalorder %s206, %s207
    %p221 = scmp.eq.s32.totalorder %s21, 1
    %p222 = por %p220, %p221
    %p224 = scmp.ne.s32.totalorder %s207, %s223
    %p225 = scmp.eq.s32.totalorder %s21, 0
    %p226 = por %p224, %p225
    %p227 = scmp.le.s32.totalorder 1, %s15
    %p228 = scmp.lt.s32.totalorder %s15, 3
    %p229 = pnand %p227, %p228
    %p230 = pneg %p229
    // Predicated region
    $region9: #{gcn_layer_forward.2} parent=5 // pred_check
      _
    $region10: #{gcn_layer_forward.2} parent=5 // pred_check_branch
      %232 = sbr.rel (%p229) target = $region12
    $region11: #{gcn_layer_forward.2} parent=5 // pred_region
      %s233 = ssub.s32 %s15, 1
      // Predicated region
      $region13: #{gcn_layer_forward.2} parent=11 // pred_check
        %p234 = pneg %p62
      $region14: #{gcn_layer_forward.2} parent=11 // pred_check_branch
        %236 = sbr.rel (%p234) target = $region16
      $region15: #{gcn_layer_forward.2} parent=11 // pred_region
        _
      $region16: #{gcn_layer_forward.2} parent=11 // pred_fallthru
        _
      // Predicated region
      $region17: #{gcn_layer_forward.2} parent=11 // pred_check
        %p237 = pneg %p83
      $region18: #{gcn_layer_forward.2} parent=11 // pred_check_branch
        %239 = sbr.rel (%p237) target = $region20
      $region19: #{gcn_layer_forward.2} parent=11 // pred_region
        _
      $region20: #{gcn_layer_forward.2} parent=11 // pred_fallthru
        _
      // Predicated region
      $region21: #{gcn_layer_forward.2} parent=11 // pred_check
        %p240 = pneg %p104
      $region22: #{gcn_layer_forward.2} parent=11 // pred_check_branch
        %242 = sbr.rel (%p240) target = $region24
      $region23: #{gcn_layer_forward.2} parent=11 // pred_region
        _
      $region24: #{gcn_layer_forward.2} parent=11 // pred_fallthru
        _
      // Predicated region
      $region25: #{gcn_layer_forward.2} parent=11 // pred_check
        %p243 = pneg %p125
      $region26: #{gcn_layer_forward.2} parent=11 // pred_check_branch
        %245 = sbr.rel (%p243) target = $region28
      $region27: #{gcn_layer_forward.2} parent=11 // pred_region
        _
      $region28: #{gcn_layer_forward.2} parent=11 // pred_fallthru
        _
      // Predicated region
      $region29: #{gcn_layer_forward.2} parent=11 // pred_check
        %p246 = pneg %p146
      $region30: #{gcn_layer_forward.2} parent=11 // pred_check_branch
        %248 = sbr.rel (%p246) target = $region32
      $region31: #{gcn_layer_forward.2} parent=11 // pred_region
        _
      $region32: #{gcn_layer_forward.2} parent=11 // pred_fallthru
        _
      // Predicated region
      $region33: #{gcn_layer_forward.2} parent=11 // pred_check
        %p249 = pneg %p167
      $region34: #{gcn_layer_forward.2} parent=11 // pred_check_branch
        %251 = sbr.rel (%p249) target = $region36
      $region35: #{gcn_layer_forward.2} parent=11 // pred_region
        _
      $region36: #{gcn_layer_forward.2} parent=11 // pred_fallthru
        _
    $region12: #{gcn_layer_forward.2} parent=5 // pred_fallthru
      _
    %p252 = scmp.lt.s32.totalorder %s15, 2
    // Predicated region
    $region37: #{gcn_layer_forward.2} parent=5 // pred_check
      %p253 = pneg %p252
    $region38: #{gcn_layer_forward.2} parent=5 // pred_check_branch
      %255 = sbr.rel (%p253) target = $region40
    $region39: #{gcn_layer_forward.2} parent=5 // pred_region
      // Predicated region
      $region41: #{gcn_layer_forward.2} parent=39 // pred_check
        %p256 = pneg %p35
      $region42: #{gcn_layer_forward.2} parent=39 // pred_check_branch
        %258 = sbr.rel (%p256) target = $region44
      $region43: #{gcn_layer_forward.2} parent=39 // pred_region
        %s259 = smul.u32 16, %s15
        %p260 = scmp.lt.s32.totalorder %s259, 31
        %s261 = scalar_select %p260, %s259, 31
        %s262 = smul.addr %s261, 8
        %s263 = scalar_lea.vmem %s0, %s262
        %s264 = smul.u32 16, %s15
      $region44: #{gcn_layer_forward.2} parent=39 // pred_fallthru
        _
    $region40: #{gcn_layer_forward.2} parent=5 // pred_fallthru
      _
    %p265 = scmp.le.s32.totalorder 1, %s15
    %p266 = scmp.lt.s32.totalorder %s15, 3
    %p267 = pnand %p265, %p266
    %p268 = pneg %p267
    // Predicated region
    $region45: #{gcn_layer_forward.2} parent=5 // pred_check
      _
    $region46: #{gcn_layer_forward.2} parent=5 // pred_check_branch
      %270 = sbr.rel (%p267) target = $region48
    $region47: #{gcn_layer_forward.2} parent=5 // pred_region
      %s271 = ssub.s32 %s15, 1
      %s272 = smul.u32 16, %s20
      %p273 = scmp.lt.s32.totalorder %s272, 31
      %s274 = scalar_select %p273, %s272, 31
      %s275 = smul.addr %s274, 8
      %s276 = scalar_lea.vmem %s0, %s275
      %p277 = pneg %p41
      %p278 = pneg %p38
      %p279 = pneg %p62
      %p280 = pneg %p59
      %p281 = pneg %p83
      %p282 = pneg %p80
      %p283 = pneg %p104
      %p284 = pneg %p101
      %p285 = pneg %p125
      %p286 = pneg %p122
      %p287 = pneg %p146
      %p288 = pneg %p143
      %p289 = pneg %p167
      %p290 = pneg %p164
      %p291 = pneg %p193
      %p292 = pneg %p190
      %s293 = smul.u32 16, %s20
      %p294 = scmp.lt.s32.totalorder %s293, 31
      %s295 = scalar_select %p294, %s293, 31
      %s296 = smul.addr %s295, 8
      %s297 = scalar_lea.vmem %s7, %s296
      %p298 = pneg %p219
      %p299 = pneg %p216
      %s300 = smul.u32 16, %s20
      %p301 = scmp.lt.s32.totalorder %s300, 31
      %s302 = scalar_select %p301, %s300, 31
      %s303 = smul.addr %s302, 8
      %s304 = scalar_lea.vmem %s8, %s303
      %s305 = smul.u32 16, %s20
      %p306 = scmp.lt.s32.totalorder %s305, 31
      %s307 = scalar_select %p306, %s305, 31
      %s308 = smul.addr %s307, 8
      %s309 = scalar_lea.vmem %s0, %s308
      %s310 = smul.u32 16, %s20
      %s311 = smul.u32 16, %s20
      %p312 = scmp.lt.s32.totalorder %s311, 31
      %s313 = scalar_select %p312, %s311, 31
      %s314 = smul.addr %s313, 8
      %s315 = scalar_lea.vmem %s7, %s314
      %s316 = smul.u32 16, %s20
      %s317 = smul.u32 16, %s20
      %p318 = scmp.lt.s32.totalorder %s317, 31
      %s319 = scalar_select %p318, %s317, 31
      %s320 = smul.addr %s319, 8
      %s321 = scalar_lea.vmem %s8, %s320
      %s322 = smul.u32 16, %s20
      %v323 = vld [vmem:[%s309] sm:$0xff]
      %v324 = vld [vmem:[%s309 + $0x8] sm:$0xff]
      %v325 = vld [vmem:[%s309 + $0x10] sm:$0xff]
      %v326 = vld [vmem:[%s309 + $0x18] sm:$0xff]
      %v327 = vld [vmem:[%s309 + $0x20] sm:$0xff]
      %v328 = vld [vmem:[%s309 + $0x28] sm:$0xff]
      %v329 = vld [vmem:[%s309 + $0x30] sm:$0xff]
      %v330 = vld [vmem:[%s309 + $0x38] sm:$0xff]
      %v331 = vld [vmem:[%s309 + $0x40] sm:$0xff]
      %v332 = vld [vmem:[%s309 + $0x48] sm:$0xff]
      %v333 = vld [vmem:[%s309 + $0x50] sm:$0xff]
      %v334 = vld [vmem:[%s309 + $0x58] sm:$0xff]
      %v335 = vld [vmem:[%s309 + $0x60] sm:$0xff]
      %v336 = vld [vmem:[%s309 + $0x68] sm:$0xff]
      %v337 = vld [vmem:[%s309 + $0x70] sm:$0xff]
      %v338 = vld [vmem:[%s309 + $0x78] sm:$0xff]
      %v339 = vld [vmem:[%s1] sm:$0xff]
      %v340 = vld [vmem:[%s1 + $0x8] sm:$0xff]
      %v341 = vld [vmem:[%s1 + $0x10] sm:$0xff]
      %v342 = vld [vmem:[%s1 + $0x18] sm:$0xff]
      %v343 = vld [vmem:[%s1 + $0x20] sm:$0xff]
      %v344 = vld [vmem:[%s1 + $0x28] sm:$0xff]
      %v345 = vld [vmem:[%s1 + $0x30] sm:$0xff]
      %v346 = vld [vmem:[%s1 + $0x38] sm:$0xff]
      %v347 = vld [vmem:[%s1 + $0x40] sm:$0xff]
      %v348 = vld [vmem:[%s1 + $0x48] sm:$0xff]
      %v349 = vld [vmem:[%s1 + $0x50] sm:$0xff]
      %v350 = vld [vmem:[%s1 + $0x58] sm:$0xff]
      %v351 = vld [vmem:[%s1 + $0x60] sm:$0xff]
      %v352 = vld [vmem:[%s1 + $0x68] sm:$0xff]
      %v353 = vld [vmem:[%s1 + $0x70] sm:$0xff]
      %v354 = vld [vmem:[%s1 + $0x78] sm:$0xff]
      %v355 = vld [vmem:[%s2] sm:$0x1]
      %v357 = vlaneseq
      %v358 = vshrl.u32 %v357, 7
      %v359 = vsub.s32 0, %v358
      %v360 = vrot.slane %v355, %v359
      %362 = vmatprep.subr.mxu0 0.0
      %363 = vmatpush1.msra.mxu0 %v354
      %364 = vmatprep.subr.mxu0 0.0
      %365 = vmatpush1.msra.mxu0 %v353
      %366 = vmatprep.subr.mxu0 0.0
      %367 = vmatpush1.msra.mxu0 %v352
      %368 = vmatprep.subr.mxu0 0.0
      %369 = vmatpush1.msra.mxu0 %v351
      %370 = vmatprep.subr.mxu0 0.0
      %371 = vmatpush1.msra.mxu0 %v350
      %372 = vmatprep.subr.mxu0 0.0
      %373 = vmatpush1.msra.mxu0 %v349
      %374 = vmatprep.subr.mxu0 0.0
      %375 = vmatpush1.msra.mxu0 %v348
      %376 = vmatprep.subr.mxu0 0.0
      %377 = vmatpush1.msra.mxu0 %v347
      %378 = vmatprep.subr.mxu0 0.0
      %379 = vmatpush1.msra.mxu0 %v346
      %380 = vmatprep.subr.mxu0 0.0
      %381 = vmatpush1.msra.mxu0 %v345
      %382 = vmatprep.subr.mxu0 0.0
      %383 = vmatpush1.msra.mxu0 %v344
      %384 = vmatprep.subr.mxu0 0.0
      %385 = vmatpush1.msra.mxu0 %v343
      %386 = vmatprep.subr.mxu0 0.0
      %387 = vmatpush1.msra.mxu0 %v342
      %388 = vmatprep.subr.mxu0 0.0
      %389 = vmatpush1.msra.mxu0 %v341
      %390 = vmatprep.subr.mxu0 0.0
      %391 = vmatpush1.msra.mxu0 %v340
      %392 = vmatprep.subr.mxu0 0.0
      %393 = vmatpush1.msra.mxu0 %v339
      %394 = vmatprep.subr.mxu0 0.0
      %395 = vmatpush2.msra.mxu0 0.0
      %396 = vmatprep.subr.mxu0 0.0
      %397 = vmatpush2.msra.mxu0 0.0
      %398 = vmatprep.subr.mxu0 0.0
      %399 = vmatpush2.msra.mxu0 0.0
      %400 = vmatprep.subr.mxu0 0.0
      %401 = vmatpush2.msra.mxu0 0.0
      %402 = vmatprep.subr.mxu0 0.0
      %403 = vmatpush2.msra.mxu0 0.0
      %404 = vmatprep.subr.mxu0 0.0
      %405 = vmatpush2.msra.mxu0 0.0
      %406 = vmatprep.subr.mxu0 0.0
      %407 = vmatpush2.msra.mxu0 0.0
      %408 = vmatprep.subr.mxu0 0.0
      %409 = vmatpush2.msra.mxu0 0.0
      %410 = vmatprep.subr.mxu0 0.0
      %411 = vmatpush2.msra.mxu0 0.0
      %412 = vmatprep.subr.mxu0 0.0
      %413 = vmatpush2.msra.mxu0 0.0
      %414 = vmatprep.subr.mxu0 0.0
      %415 = vmatpush2.msra.mxu0 0.0
      %416 = vmatprep.subr.mxu0 0.0
      %417 = vmatpush2.msra.mxu0 0.0
      %418 = vmatprep.subr.mxu0 0.0
      %419 = vmatpush2.msra.mxu0 0.0
      %420 = vmatprep.subr.mxu0 0.0
      %421 = vmatpush2.msra.mxu0 0.0
      %422 = vmatprep.subr.mxu0 0.0
      %423 = vmatpush2.msra.mxu0 0.0
      %424 = vmatprep.subr.mxu0 0.0
      %425 = vmatpush2.msra.mxu0 0.0
      %426 = vmatprep.mubr.f32.mxu0 0.0
      %427 = vmatmul.mubr.f32.gmra.mxu0 %v323
      %v428 = vpop.f32.mrf.mxu0
      %v429 = vadd.f32 %v360, %v428
      %v430 = vpop.f32.mrf.mxu0
      %431 = vmatprep.mubr.f32.mxu0 0.0
      %432 = vmatmul.mubr.f32.gmra.mxu0 %v324
      %v433 = vpop.f32.mrf.mxu0
      %v434 = vadd.f32 %v360, %v433
      %v435 = vpop.f32.mrf.mxu0
      %436 = vmatprep.mubr.f32.mxu0 0.0
      %437 = vmatmul.mubr.f32.gmra.mxu0 %v325
      %v438 = vpop.f32.mrf.mxu0
      %v439 = vadd.f32 %v360, %v438
      %v440 = vpop.f32.mrf.mxu0
      %441 = vmatprep.mubr.f32.mxu0 0.0
      %442 = vmatmul.mubr.f32.gmra.mxu0 %v326
      %v443 = vpop.f32.mrf.mxu0
      %v444 = vadd.f32 %v360, %v443
      %v445 = vpop.f32.mrf.mxu0
      %446 = vmatprep.mubr.f32.mxu0 0.0
      %447 = vmatmul.mubr.f32.gmra.mxu0 %v327
      %v448 = vpop.f32.mrf.mxu0
      %v449 = vadd.f32 %v360, %v448
      %v450 = vpop.f32.mrf.mxu0
      %451 = vmatprep.mubr.f32.mxu0 0.0
      %452 = vmatmul.mubr.f32.gmra.mxu0 %v328
      %v453 = vpop.f32.mrf.mxu0
      %v454 = vadd.f32 %v360, %v453
      %v455 = vpop.f32.mrf.mxu0
      %456 = vmatprep.mubr.f32.mxu0 0.0
      %457 = vmatmul.mubr.f32.gmra.mxu0 %v329
      %v458 = vpop.f32.mrf.mxu0
      %v459 = vadd.f32 %v360, %v458
      %v460 = vpop.f32.mrf.mxu0
      %461 = vmatprep.mubr.f32.mxu0 0.0
      %462 = vmatmul.mubr.f32.gmra.mxu0 %v330
      %v463 = vpop.f32.mrf.mxu0
      %v464 = vadd.f32 %v360, %v463
      %v465 = vpop.f32.mrf.mxu0
      %466 = vmatprep.mubr.f32.mxu0 0.0
      %467 = vmatmul.mubr.f32.gmra.mxu0 %v331
      %v468 = vpop.f32.mrf.mxu0
      %v469 = vadd.f32 %v360, %v468
      %v470 = vpop.f32.mrf.mxu0
      %471 = vmatprep.mubr.f32.mxu0 0.0
      %472 = vmatmul.mubr.f32.gmra.mxu0 %v332
      %v473 = vpop.f32.mrf.mxu0
      %v474 = vadd.f32 %v360, %v473
      %v475 = vpop.f32.mrf.mxu0
      %476 = vmatprep.mubr.f32.mxu0 0.0
      %477 = vmatmul.mubr.f32.gmra.mxu0 %v333
      %v478 = vpop.f32.mrf.mxu0
      %v479 = vadd.f32 %v360, %v478
      %v480 = vpop.f32.mrf.mxu0
      %481 = vmatprep.mubr.f32.mxu0 0.0
      %482 = vmatmul.mubr.f32.gmra.mxu0 %v334
      %v483 = vpop.f32.mrf.mxu0
      %v484 = vadd.f32 %v360, %v483
      %v485 = vpop.f32.mrf.mxu0
      %486 = vmatprep.mubr.f32.mxu0 0.0
      %487 = vmatmul.mubr.f32.gmra.mxu0 %v335
      %v488 = vpop.f32.mrf.mxu0
      %v489 = vadd.f32 %v360, %v488
      %v490 = vpop.f32.mrf.mxu0
      %491 = vmatprep.mubr.f32.mxu0 0.0
      %492 = vmatmul.mubr.f32.gmra.mxu0 %v336
      %v493 = vpop.f32.mrf.mxu0
      %v494 = vadd.f32 %v360, %v493
      %v495 = vpop.f32.mrf.mxu0
      %496 = vmatprep.mubr.f32.mxu0 0.0
      %497 = vmatmul.mubr.f32.gmra.mxu0 %v337
      %v498 = vpop.f32.mrf.mxu0
      %v499 = vadd.f32 %v360, %v498
      %v500 = vpop.f32.mrf.mxu0
      %501 = vmatprep.mubr.f32.mxu0 0.0
      %502 = vmatmul.mubr.f32.gmra.mxu0 %v338
      %v503 = vpop.f32.mrf.mxu0
      %v504 = vadd.f32 %v360, %v503
      %v505 = vpop.f32.mrf.mxu0
      %506 = vdwg.mxu0
      %v507 = vmax.f32 %v429, 0.0
      %v508 = vmax.f32 %v434, 0.0
      %v509 = vmax.f32 %v439, 0.0
      %v510 = vmax.f32 %v444, 0.0
      %v511 = vmax.f32 %v449, 0.0
      %v512 = vmax.f32 %v454, 0.0
      %v513 = vmax.f32 %v459, 0.0
      %v514 = vmax.f32 %v464, 0.0
      %v515 = vmax.f32 %v469, 0.0
      %v516 = vmax.f32 %v474, 0.0
      %v517 = vmax.f32 %v479, 0.0
      %v518 = vmax.f32 %v484, 0.0
      %v519 = vmax.f32 %v489, 0.0
      %v520 = vmax.f32 %v494, 0.0
      %v521 = vmax.f32 %v499, 0.0
      %v522 = vmax.f32 %v504, 0.0
      %v523 = vld [vmem:[%s3] sm:$0xff]
      %v524 = vld [vmem:[%s3 + $0x8] sm:$0xff]
      %v525 = vld [vmem:[%s3 + $0x10] sm:$0xff]
      %v526 = vld [vmem:[%s3 + $0x18] sm:$0xff]
      %v527 = vld [vmem:[%s3 + $0x20] sm:$0xff]
      %v528 = vld [vmem:[%s3 + $0x28] sm:$0xff]
      %v529 = vld [vmem:[%s3 + $0x30] sm:$0xff]
      %v530 = vld [vmem:[%s3 + $0x38] sm:$0xff]
      %v531 = vld [vmem:[%s3 + $0x40] sm:$0xff]
      %v532 = vld [vmem:[%s3 + $0x48] sm:$0xff]
      %v533 = vld [vmem:[%s3 + $0x50] sm:$0xff]
      %v534 = vld [vmem:[%s3 + $0x58] sm:$0xff]
      %v535 = vld [vmem:[%s3 + $0x60] sm:$0xff]
      %v536 = vld [vmem:[%s3 + $0x68] sm:$0xff]
      %v537 = vld [vmem:[%s3 + $0x70] sm:$0xff]
      %v538 = vld [vmem:[%s3 + $0x78] sm:$0xff]
      %v539 = vld [vmem:[%s4] sm:$0x1]
      %v541 = vlaneseq
      %v542 = vshrl.u32 %v541, 7
      %v543 = vsub.s32 0, %v542
      %v544 = vrot.slane %v539, %v543
      %546 = vmatprep.subr.mxu0 0.0
      %547 = vmatpush1.msra.mxu0 %v538
      %548 = vmatprep.subr.mxu0 0.0
      %549 = vmatpush1.msra.mxu0 %v537
      %550 = vmatprep.subr.mxu0 0.0
      %551 = vmatpush1.msra.mxu0 %v536
      %552 = vmatprep.subr.mxu0 0.0
      %553 = vmatpush1.msra.mxu0 %v535
      %554 = vmatprep.subr.mxu0 0.0
      %555 = vmatpush1.msra.mxu0 %v534
      %556 = vmatprep.subr.mxu0 0.0
      %557 = vmatpush1.msra.mxu0 %v533
      %558 = vmatprep.subr.mxu0 0.0
      %559 = vmatpush1.msra.mxu0 %v532
      %560 = vmatprep.subr.mxu0 0.0
      %561 = vmatpush1.msra.mxu0 %v531
      %562 = vmatprep.subr.mxu0 0.0
      %563 = vmatpush1.msra.mxu0 %v530
      %564 = vmatprep.subr.mxu0 0.0
      %565 = vmatpush1.msra.mxu0 %v529
      %566 = vmatprep.subr.mxu0 0.0
      %567 = vmatpush1.msra.mxu0 %v528
      %568 = vmatprep.subr.mxu0 0.0
      %569 = vmatpush1.msra.mxu0 %v527
      %570 = vmatprep.subr.mxu0 0.0
      %571 = vmatpush1.msra.mxu0 %v526
      %572 = vmatprep.subr.mxu0 0.0
      %573 = vmatpush1.msra.mxu0 %v525
      %574 = vmatprep.subr.mxu0 0.0
      %575 = vmatpush1.msra.mxu0 %v524
      %576 = vmatprep.subr.mxu0 0.0
      %577 = vmatpush1.msra.mxu0 %v523
      %578 = vmatprep.subr.mxu0 0.0
      %579 = vmatpush2.msra.mxu0 0.0
      %580 = vmatprep.subr.mxu0 0.0
      %581 = vmatpush2.msra.mxu0 0.0
      %582 = vmatprep.subr.mxu0 0.0
      %583 = vmatpush2.msra.mxu0 0.0
      %584 = vmatprep.subr.mxu0 0.0
      %585 = vmatpush2.msra.mxu0 0.0
      %586 = vmatprep.subr.mxu0 0.0
      %587 = vmatpush2.msra.mxu0 0.0
      %588 = vmatprep.subr.mxu0 0.0
      %589 = vmatpush2.msra.mxu0 0.0
      %590 = vmatprep.subr.mxu0 0.0
      %591 = vmatpush2.msra.mxu0 0.0
      %592 = vmatprep.subr.mxu0 0.0
      %593 = vmatpush2.msra.mxu0 0.0
      %594 = vmatprep.subr.mxu0 0.0
      %595 = vmatpush2.msra.mxu0 0.0
      %596 = vmatprep.subr.mxu0 0.0
      %597 = vmatpush2.msra.mxu0 0.0
      %598 = vmatprep.subr.mxu0 0.0
      %599 = vmatpush2.msra.mxu0 0.0
      %600 = vmatprep.subr.mxu0 0.0
      %601 = vmatpush2.msra.mxu0 0.0
      %602 = vmatprep.subr.mxu0 0.0
      %603 = vmatpush2.msra.mxu0 0.0
      %604 = vmatprep.subr.mxu0 0.0
      %605 = vmatpush2.msra.mxu0 0.0
      %606 = vmatprep.subr.mxu0 0.0
      %607 = vmatpush2.msra.mxu0 0.0
      %608 = vmatprep.subr.mxu0 0.0
      %609 = vmatpush2.msra.mxu0 0.0
      %610 = vmatprep.mubr.f32.mxu0 0.0
      %611 = vmatmul.mubr.f32.gmra.mxu0 %v507
      %v612 = vpop.f32.mrf.mxu0
      %v613 = vadd.f32 %v544, %v612
      %v614 = vpop.f32.mrf.mxu0
      %615 = vmatprep.mubr.f32.mxu0 0.0
      %616 = vmatmul.mubr.f32.gmra.mxu0 %v508
      %v617 = vpop.f32.mrf.mxu0
      %v618 = vadd.f32 %v544, %v617
      %v619 = vpop.f32.mrf.mxu0
      %620 = vmatprep.mubr.f32.mxu0 0.0
      %621 = vmatmul.mubr.f32.gmra.mxu0 %v509
      %v622 = vpop.f32.mrf.mxu0
      %v623 = vadd.f32 %v544, %v622
      %v624 = vpop.f32.mrf.mxu0
      %625 = vmatprep.mubr.f32.mxu0 0.0
      %626 = vmatmul.mubr.f32.gmra.mxu0 %v510
      %v627 = vpop.f32.mrf.mxu0
      %v628 = vadd.f32 %v544, %v627
      %v629 = vpop.f32.mrf.mxu0
      %630 = vmatprep.mubr.f32.mxu0 0.0
      %631 = vmatmul.mubr.f32.gmra.mxu0 %v511
      %v632 = vpop.f32.mrf.mxu0
      %v633 = vadd.f32 %v544, %v632
      %v634 = vpop.f32.mrf.mxu0
      %635 = vmatprep.mubr.f32.mxu0 0.0
      %636 = vmatmul.mubr.f32.gmra.mxu0 %v512
      %v637 = vpop.f32.mrf.mxu0
      %v638 = vadd.f32 %v544, %v637
      %v639 = vpop.f32.mrf.mxu0
      %640 = vmatprep.mubr.f32.mxu0 0.0
      %641 = vmatmul.mubr.f32.gmra.mxu0 %v513
      %v642 = vpop.f32.mrf.mxu0
      %v643 = vadd.f32 %v544, %v642
      %v644 = vpop.f32.mrf.mxu0
      %645 = vmatprep.mubr.f32.mxu0 0.0
      %646 = vmatmul.mubr.f32.gmra.mxu0 %v514
      %v647 = vpop.f32.mrf.mxu0
      %v648 = vadd.f32 %v544, %v647
      %v649 = vpop.f32.mrf.mxu0
      %650 = vmatprep.mubr.f32.mxu0 0.0
      %651 = vmatmul.mubr.f32.gmra.mxu0 %v515
      %v652 = vpop.f32.mrf.mxu0
      %v653 = vadd.f32 %v544, %v652
      %v654 = vpop.f32.mrf.mxu0
      %655 = vmatprep.mubr.f32.mxu0 0.0
      %656 = vmatmul.mubr.f32.gmra.mxu0 %v516
      %v657 = vpop.f32.mrf.mxu0
      %v658 = vadd.f32 %v544, %v657
      %v659 = vpop.f32.mrf.mxu0
      %660 = vmatprep.mubr.f32.mxu0 0.0
      %661 = vmatmul.mubr.f32.gmra.mxu0 %v517
      %v662 = vpop.f32.mrf.mxu0
      %v663 = vadd.f32 %v544, %v662
      %v664 = vpop.f32.mrf.mxu0
      %665 = vmatprep.mubr.f32.mxu0 0.0
      %666 = vmatmul.mubr.f32.gmra.mxu0 %v518
      %v667 = vpop.f32.mrf.mxu0
      %v668 = vadd.f32 %v544, %v667
      %v669 = vpop.f32.mrf.mxu0
      %670 = vmatprep.mubr.f32.mxu0 0.0
      %671 = vmatmul.mubr.f32.gmra.mxu0 %v519
      %v672 = vpop.f32.mrf.mxu0
      %v673 = vadd.f32 %v544, %v672
      %v674 = vpop.f32.mrf.mxu0
      %675 = vmatprep.mubr.f32.mxu0 0.0
      %676 = vmatmul.mubr.f32.gmra.mxu0 %v520
      %v677 = vpop.f32.mrf.mxu0
      %v678 = vadd.f32 %v544, %v677
      %v679 = vpop.f32.mrf.mxu0
      %680 = vmatprep.mubr.f32.mxu0 0.0
      %681 = vmatmul.mubr.f32.gmra.mxu0 %v521
      %v682 = vpop.f32.mrf.mxu0
      %v683 = vadd.f32 %v544, %v682
      %v684 = vpop.f32.mrf.mxu0
      %685 = vmatprep.mubr.f32.mxu0 0.0
      %686 = vmatmul.mubr.f32.gmra.mxu0 %v522
      %v687 = vpop.f32.mrf.mxu0
      %v688 = vadd.f32 %v544, %v687
      %v689 = vpop.f32.mrf.mxu0
      %690 = vdwg.mxu0
      %v691 = vmax.f32 %v613, 0.0
      %v692 = vmax.f32 %v618, 0.0
      %v693 = vmax.f32 %v623, 0.0
      %v694 = vmax.f32 %v628, 0.0
      %v695 = vmax.f32 %v633, 0.0
      %v696 = vmax.f32 %v638, 0.0
      %v697 = vmax.f32 %v643, 0.0
      %v698 = vmax.f32 %v648, 0.0
      %v699 = vmax.f32 %v653, 0.0
      %v700 = vmax.f32 %v658, 0.0
      %v701 = vmax.f32 %v663, 0.0
      %v702 = vmax.f32 %v668, 0.0
      %v703 = vmax.f32 %v673, 0.0
      %v704 = vmax.f32 %v678, 0.0
      %v705 = vmax.f32 %v683, 0.0
      %v706 = vmax.f32 %v688, 0.0
      %v707 = vld [vmem:[%s5] sm:$0xff]
      %v708 = vld [vmem:[%s5 + $0x8] sm:$0xff]
      %v709 = vld [vmem:[%s5 + $0x10] sm:$0xff]
      %v710 = vld [vmem:[%s5 + $0x18] sm:$0xff]
      %v711 = vld [vmem:[%s5 + $0x20] sm:$0xff]
      %v712 = vld [vmem:[%s5 + $0x28] sm:$0xff]
      %v713 = vld [vmem:[%s5 + $0x30] sm:$0xff]
      %v714 = vld [vmem:[%s5 + $0x38] sm:$0xff]
      %v715 = vld [vmem:[%s5 + $0x40] sm:$0xff]
      %v716 = vld [vmem:[%s5 + $0x48] sm:$0xff]
      %v717 = vld [vmem:[%s5 + $0x50] sm:$0xff]
      %v718 = vld [vmem:[%s5 + $0x58] sm:$0xff]
      %v719 = vld [vmem:[%s5 + $0x60] sm:$0xff]
      %v720 = vld [vmem:[%s5 + $0x68] sm:$0xff]
      %v721 = vld [vmem:[%s5 + $0x70] sm:$0xff]
      %v722 = vld [vmem:[%s5 + $0x78] sm:$0xff]
      %v723 = vld [vmem:[%s6] sm:$0x1]
      %v725 = vlaneseq
      %v726 = vshrl.u32 %v725, 7
      %v727 = vsub.s32 0, %v726
      %v728 = vrot.slane %v723, %v727
      %730 = vmatprep.subr.mxu0 0.0
      %731 = vmatpush1.msra.mxu0 %v722
      %732 = vmatprep.subr.mxu0 0.0
      %733 = vmatpush1.msra.mxu0 %v721
      %734 = vmatprep.subr.mxu0 0.0
      %735 = vmatpush1.msra.mxu0 %v720
      %736 = vmatprep.subr.mxu0 0.0
      %737 = vmatpush1.msra.mxu0 %v719
      %738 = vmatprep.subr.mxu0 0.0
      %739 = vmatpush1.msra.mxu0 %v718
      %740 = vmatprep.subr.mxu0 0.0
      %741 = vmatpush1.msra.mxu0 %v717
      %742 = vmatprep.subr.mxu0 0.0
      %743 = vmatpush1.msra.mxu0 %v716
      %744 = vmatprep.subr.mxu0 0.0
      %745 = vmatpush1.msra.mxu0 %v715
      %746 = vmatprep.subr.mxu0 0.0
      %747 = vmatpush1.msra.mxu0 %v714
      %748 = vmatprep.subr.mxu0 0.0
      %749 = vmatpush1.msra.mxu0 %v713
      %750 = vmatprep.subr.mxu0 0.0
      %751 = vmatpush1.msra.mxu0 %v712
      %752 = vmatprep.subr.mxu0 0.0
      %753 = vmatpush1.msra.mxu0 %v711
      %754 = vmatprep.subr.mxu0 0.0
      %755 = vmatpush1.msra.mxu0 %v710
      %756 = vmatprep.subr.mxu0 0.0
      %757 = vmatpush1.msra.mxu0 %v709
      %758 = vmatprep.subr.mxu0 0.0
      %759 = vmatpush1.msra.mxu0 %v708
      %760 = vmatprep.subr.mxu0 0.0
      %761 = vmatpush1.msra.mxu0 %v707
      %762 = vmatprep.subr.mxu0 0.0
      %763 = vmatpush2.msra.mxu0 0.0
      %764 = vmatprep.subr.mxu0 0.0
      %765 = vmatpush2.msra.mxu0 0.0
      %766 = vmatprep.subr.mxu0 0.0
      %767 = vmatpush2.msra.mxu0 0.0
      %768 = vmatprep.subr.mxu0 0.0
      %769 = vmatpush2.msra.mxu0 0.0
      %770 = vmatprep.subr.mxu0 0.0
      %771 = vmatpush2.msra.mxu0 0.0
      %772 = vmatprep.subr.mxu0 0.0
      %773 = vmatpush2.msra.mxu0 0.0
      %774 = vmatprep.subr.mxu0 0.0
      %775 = vmatpush2.msra.mxu0 0.0
      %776 = vmatprep.subr.mxu0 0.0
      %777 = vmatpush2.msra.mxu0 0.0
      %778 = vmatprep.subr.mxu0 0.0
      %779 = vmatpush2.msra.mxu0 0.0
      %780 = vmatprep.subr.mxu0 0.0
      %781 = vmatpush2.msra.mxu0 0.0
      %782 = vmatprep.subr.mxu0 0.0
      %783 = vmatpush2.msra.mxu0 0.0
      %784 = vmatprep.subr.mxu0 0.0
      %785 = vmatpush2.msra.mxu0 0.0
      %786 = vmatprep.subr.mxu0 0.0
      %787 = vmatpush2.msra.mxu0 0.0
      %788 = vmatprep.subr.mxu0 0.0
      %789 = vmatpush2.msra.mxu0 0.0
      %790 = vmatprep.subr.mxu0 0.0
      %791 = vmatpush2.msra.mxu0 0.0
      %792 = vmatprep.subr.mxu0 0.0
      %793 = vmatpush2.msra.mxu0 0.0
      %794 = vmatprep.mubr.f32.mxu0 0.0
      %795 = vmatmul.mubr.f32.gmra.mxu0 %v691
      %v796 = vpop.f32.mrf.mxu0
      %v797 = vadd.f32 %v728, %v796
      %v798 = vpop.f32.mrf.mxu0
      %799 = vmatprep.mubr.f32.mxu0 0.0
      %800 = vmatmul.mubr.f32.gmra.mxu0 %v692
      %v801 = vpop.f32.mrf.mxu0
      %v802 = vadd.f32 %v728, %v801
      %v803 = vpop.f32.mrf.mxu0
      %804 = vmatprep.mubr.f32.mxu0 0.0
      %805 = vmatmul.mubr.f32.gmra.mxu0 %v693
      %v806 = vpop.f32.mrf.mxu0
      %v807 = vadd.f32 %v728, %v806
      %v808 = vpop.f32.mrf.mxu0
      %809 = vmatprep.mubr.f32.mxu0 0.0
      %810 = vmatmul.mubr.f32.gmra.mxu0 %v694
      %v811 = vpop.f32.mrf.mxu0
      %v812 = vadd.f32 %v728, %v811
      %v813 = vpop.f32.mrf.mxu0
      %814 = vmatprep.mubr.f32.mxu0 0.0
      %815 = vmatmul.mubr.f32.gmra.mxu0 %v695
      %v816 = vpop.f32.mrf.mxu0
      %v817 = vadd.f32 %v728, %v816
      %v818 = vpop.f32.mrf.mxu0
      %819 = vmatprep.mubr.f32.mxu0 0.0
      %820 = vmatmul.mubr.f32.gmra.mxu0 %v696
      %v821 = vpop.f32.mrf.mxu0
      %v822 = vadd.f32 %v728, %v821
      %v823 = vpop.f32.mrf.mxu0
      %824 = vmatprep.mubr.f32.mxu0 0.0
      %825 = vmatmul.mubr.f32.gmra.mxu0 %v697
      %v826 = vpop.f32.mrf.mxu0
      %v827 = vadd.f32 %v728, %v826
      %v828 = vpop.f32.mrf.mxu0
      %829 = vmatprep.mubr.f32.mxu0 0.0
      %830 = vmatmul.mubr.f32.gmra.mxu0 %v698
      %v831 = vpop.f32.mrf.mxu0
      %v832 = vadd.f32 %v728, %v831
      %v833 = vpop.f32.mrf.mxu0
      %834 = vmatprep.mubr.f32.mxu0 0.0
      %835 = vmatmul.mubr.f32.gmra.mxu0 %v699
      %v836 = vpop.f32.mrf.mxu0
      %v837 = vadd.f32 %v728, %v836
      %v838 = vpop.f32.mrf.mxu0
      %839 = vmatprep.mubr.f32.mxu0 0.0
      %840 = vmatmul.mubr.f32.gmra.mxu0 %v700
      %v841 = vpop.f32.mrf.mxu0
      %v842 = vadd.f32 %v728, %v841
      %v843 = vpop.f32.mrf.mxu0
      %844 = vmatprep.mubr.f32.mxu0 0.0
      %845 = vmatmul.mubr.f32.gmra.mxu0 %v701
      %v846 = vpop.f32.mrf.mxu0
      %v847 = vadd.f32 %v728, %v846
      %v848 = vpop.f32.mrf.mxu0
      %849 = vmatprep.mubr.f32.mxu0 0.0
      %850 = vmatmul.mubr.f32.gmra.mxu0 %v702
      %v851 = vpop.f32.mrf.mxu0
      %v852 = vadd.f32 %v728, %v851
      %v853 = vpop.f32.mrf.mxu0
      %854 = vmatprep.mubr.f32.mxu0 0.0
      %855 = vmatmul.mubr.f32.gmra.mxu0 %v703
      %v856 = vpop.f32.mrf.mxu0
      %v857 = vadd.f32 %v728, %v856
      %v858 = vpop.f32.mrf.mxu0
      %859 = vmatprep.mubr.f32.mxu0 0.0
      %860 = vmatmul.mubr.f32.gmra.mxu0 %v704
      %v861 = vpop.f32.mrf.mxu0
      %v862 = vadd.f32 %v728, %v861
      %v863 = vpop.f32.mrf.mxu0
      %864 = vmatprep.mubr.f32.mxu0 0.0
      %865 = vmatmul.mubr.f32.gmra.mxu0 %v705
      %v866 = vpop.f32.mrf.mxu0
      %v867 = vadd.f32 %v728, %v866
      %v868 = vpop.f32.mrf.mxu0
      %869 = vmatprep.mubr.f32.mxu0 0.0
      %870 = vmatmul.mubr.f32.gmra.mxu0 %v706
      %v871 = vpop.f32.mrf.mxu0
      %v872 = vadd.f32 %v728, %v871
      %v873 = vpop.f32.mrf.mxu0
      %874 = vdwg.mxu0
      %v875 = vmax.f32 %v797, 0.0
      %v876 = vmax.f32 %v802, 0.0
      %v877 = vmax.f32 %v807, 0.0
      %v878 = vmax.f32 %v812, 0.0
      %v879 = vmax.f32 %v817, 0.0
      %v880 = vmax.f32 %v822, 0.0
      %v881 = vmax.f32 %v827, 0.0
      %v882 = vmax.f32 %v832, 0.0
      %v883 = vmax.f32 %v837, 0.0
      %v884 = vmax.f32 %v842, 0.0
      %v885 = vmax.f32 %v847, 0.0
      %v886 = vmax.f32 %v852, 0.0
      %v887 = vmax.f32 %v857, 0.0
      %v888 = vmax.f32 %v862, 0.0
      %v889 = vmax.f32 %v867, 0.0
      %v890 = vmax.f32 %v872, 0.0
      %891 = vst [vmem:[%s315] sm:$0xff] %v507
      %892 = vst [vmem:[%s315 + $0x8] sm:$0xff] %v508
      %893 = vst [vmem:[%s315 + $0x10] sm:$0xff] %v509
      %894 = vst [vmem:[%s315 + $0x18] sm:$0xff] %v510
      %895 = vst [vmem:[%s315 + $0x20] sm:$0xff] %v511
      %896 = vst [vmem:[%s315 + $0x28] sm:$0xff] %v512
      %897 = vst [vmem:[%s315 + $0x30] sm:$0xff] %v513
      %898 = vst [vmem:[%s315 + $0x38] sm:$0xff] %v514
      %899 = vst [vmem:[%s315 + $0x40] sm:$0xff] %v515
      %900 = vst [vmem:[%s315 + $0x48] sm:$0xff] %v516
      %901 = vst [vmem:[%s315 + $0x50] sm:$0xff] %v517
      %902 = vst [vmem:[%s315 + $0x58] sm:$0xff] %v518
      %903 = vst [vmem:[%s315 + $0x60] sm:$0xff] %v519
      %904 = vst [vmem:[%s315 + $0x68] sm:$0xff] %v520
      %905 = vst [vmem:[%s315 + $0x70] sm:$0xff] %v521
      %906 = vst [vmem:[%s315 + $0x78] sm:$0xff] %v522
      %907 = vst [vmem:[%s321] sm:$0xff] %v875
      %908 = vst [vmem:[%s321 + $0x8] sm:$0xff] %v876
      %909 = vst [vmem:[%s321 + $0x10] sm:$0xff] %v877
      %910 = vst [vmem:[%s321 + $0x18] sm:$0xff] %v878
      %911 = vst [vmem:[%s321 + $0x20] sm:$0xff] %v879
      %912 = vst [vmem:[%s321 + $0x28] sm:$0xff] %v880
      %913 = vst [vmem:[%s321 + $0x30] sm:$0xff] %v881
      %914 = vst [vmem:[%s321 + $0x38] sm:$0xff] %v882
      %915 = vst [vmem:[%s321 + $0x40] sm:$0xff] %v883
      %916 = vst [vmem:[%s321 + $0x48] sm:$0xff] %v884
      %917 = vst [vmem:[%s321 + $0x50] sm:$0xff] %v885
      %918 = vst [vmem:[%s321 + $0x58] sm:$0xff] %v886
      %919 = vst [vmem:[%s321 + $0x60] sm:$0xff] %v887
      %920 = vst [vmem:[%s321 + $0x68] sm:$0xff] %v888
      %921 = vst [vmem:[%s321 + $0x70] sm:$0xff] %v889
      %922 = vst [vmem:[%s321 + $0x78] sm:$0xff] %v890
      %s923 = smul.u32 16, %s20
      %p924 = scmp.lt.s32.totalorder %s923, 31
      %s925 = scalar_select %p924, %s923, 31
      %s926 = smul.addr %s925, 8
      %s927 = scalar_lea.vmem %s7, %s926
      %s928 = smul.u32 16, %s20
      %p929 = scmp.lt.s32.totalorder %s928, 31
      %s930 = scalar_select %p929, %s928, 31
      %s931 = smul.addr %s930, 8
      %s932 = scalar_lea.vmem %s8, %s931
      // Predicated region
      $region49: #{gcn_layer_forward.2} parent=47 // pred_check
        %p933 = pneg %p190
      $region50: #{gcn_layer_forward.2} parent=47 // pred_check_branch
        %935 = sbr.rel (%p933) target = $region52
      $region51: #{gcn_layer_forward.2} parent=47 // pred_region
        %s936 = smul.u32 16, %s20
      $region52: #{gcn_layer_forward.2} parent=47 // pred_fallthru
        _
      // Predicated region
      $region53: #{gcn_layer_forward.2} parent=47 // pred_check
        %p937 = pneg %p216
      $region54: #{gcn_layer_forward.2} parent=47 // pred_check_branch
        %939 = sbr.rel (%p937) target = $region56
      $region55: #{gcn_layer_forward.2} parent=47 // pred_region
        %s940 = smul.u32 16, %s20
      $region56: #{gcn_layer_forward.2} parent=47 // pred_fallthru
        _
    $region48: #{gcn_layer_forward.2} parent=5 // pred_fallthru
      _
    %p941 = scmp.le.s32.totalorder 2, %s15
    // Predicated region
    $region57: #{gcn_layer_forward.2} parent=5 // pred_check
      %p942 = pneg %p941
    $region58: #{gcn_layer_forward.2} parent=5 // pred_check_branch
      %944 = sbr.rel (%p942) target = $region60
    $region59: #{gcn_layer_forward.2} parent=5 // pred_region
      %s945 = ssub.s32 %s15, 2
      // Predicated region
      $region61: #{gcn_layer_forward.2} parent=59 // pred_check
        %p946 = pneg %p196
      $region62: #{gcn_layer_forward.2} parent=59 // pred_check_branch
        %948 = sbr.rel (%p946) target = $region64
      $region63: #{gcn_layer_forward.2} parent=59 // pred_region
        %s949 = smul.u32 16, %s21
        %p950 = scmp.lt.s32.totalorder %s949, 31
        %s951 = scalar_select %p950, %s949, 31
        %s952 = smul.addr %s951, 8
        %s953 = scalar_lea.vmem %s7, %s952
      $region64: #{gcn_layer_forward.2} parent=59 // pred_fallthru
        _
      // Predicated region
      $region65: #{gcn_layer_forward.2} parent=59 // pred_check
        %p954 = pneg %p222
      $region66: #{gcn_layer_forward.2} parent=59 // pred_check_branch
        %956 = sbr.rel (%p954) target = $region68
      $region67: #{gcn_layer_forward.2} parent=59 // pred_region
        %s957 = smul.u32 16, %s21
        %p958 = scmp.lt.s32.totalorder %s957, 31
        %s959 = scalar_select %p958, %s957, 31
        %s960 = smul.addr %s959, 8
        %s961 = scalar_lea.vmem %s8, %s960
      $region68: #{gcn_layer_forward.2} parent=59 // pred_fallthru
        _
    $region60: #{gcn_layer_forward.2} parent=5 // pred_fallthru
      _
  $region6: #{gcn_layer_forward.2} parent=0 // loop_footer
    %s19 = sadd.s32 1, %s15
  $region7: #{gcn_layer_forward.2} parent=0 // loop_footer_branch
    %14 = sbr.rel target = $region3
  $region8: #{gcn_layer_forward.2} parent=0 // loop_exit
    _

// kernel: gcn_layer_forward.3
$region0: #{gcn_layer_forward.3}
  #allocation0 [shape = 'u32[]', space=smem, size = 0x4, offset = 0x4, fixed_abs, tag = 'smem constant byte address 0x4 - core index']
  #allocation1 [shape = 'u32[144,128]{1,0:T(1,128)}', space=vmem, size = 0x12000, scoped, tag = 'internal scratch']
  #allocation2 [shape = 'f32[128,128]{1,0:T(8,128)}', space=vmem, size = 0x10000, scoped, tag = 'scratch operand']
  %s0 = inlined_call_operand.vmem [shape: bf16[256,256], index: 0, kind: input, shape index: {}]
  %s1 = inlined_call_operand.vmem [shape: f32[256,128], index: 1, kind: input, shape index: {}]
  %s2 = inlined_call_operand.vmem [shape: f32[256,128], index: 2, kind: input, shape index: {}]
  %s3 = inlined_call_operand.vmem [shape: f32[128,128], index: 3, kind: input, shape index: {}]
  %s4 = inlined_call_operand.vmem [shape: f32[1,128], index: 4, kind: input, shape index: {}]
  %s5 = inlined_call_operand.vmem [shape: f32[128,128], index: 5, kind: input, shape index: {}]
  %s6 = inlined_call_operand.vmem [shape: f32[1,128], index: 6, kind: input, shape index: {}]
  %s7 = inlined_call_operand.vmem [shape: f32[256,128], index: 7, kind: output, shape index: {}]
  %s8 = sld [smem:[#allocation0]]
  $region110: #{gcn_layer_forward.3} parent=0
    _
  %s10 = ssub.s32 1, %s8
  %s11 = scalar_select 0, %s10, %s8
  $region1: #{gcn_layer_forward.3} parent=0
    #allocation3 [shape = 'u8[65536]{0}', space=vmem, size = 0x10000, scoped, tag = 'input window, operand 0']
    loop: start=0, step=1, limit=6
    $region2: #{gcn_layer_forward.3} parent=1 // loop_pre_header
      _
    $region3: #{gcn_layer_forward.3} parent=1 // loop_header
      %s13 = sphi 0, %s17
      %p14 = scmp.ge.s32.totalorder %s13, 6
      %s20 = sphi 0, %s32
      %s21 = sphi 0, %s28
      %s22 = sphi 0, %s20
      %s23 = sphi 0, %s21
      %s24 = sphi 0, %s22
      %s25 = sphi 0, %s23
      %s37 = sphi 0, %s39
      %s40 = sphi 0, %s37
      %s41 = sphi 0, %s40
      %s57 = sphi 0, %s41
      %s63 = sphi 0, %s65
      %s66 = sphi 0, %s63
      %s67 = sphi 0, %s66
      %s83 = sphi 0, %s67
      %s89 = sphi 0, %s91
      %s92 = sphi 0, %s89
      %s93 = sphi 0, %s92
      %s109 = sphi 0, %s93
      %s113 = sphi 0, %s113
      %s115 = sphi 0, %s113
      %s116 = sphi 0, %s115
      %s130 = sphi 0, %s116
      %s134 = sphi 0, %s134
      %s136 = sphi 0, %s134
      %s137 = sphi 0, %s136
      %s151 = sphi 0, %s137
      %s155 = sphi 0, %s155
      %s157 = sphi 0, %s155
      %s158 = sphi 0, %s157
      %s172 = sphi 0, %s158
      %s176 = sphi 0, %s176
      %s178 = sphi 0, %s176
      %s179 = sphi 0, %s178
      %s193 = sphi 0, %s179
      %s199 = sphi 0, %s201
      %s202 = sphi 0, %s199
      %s203 = sphi 0, %s202
      %s219 = sphi 0, %s203
    $region4: #{gcn_layer_forward.3} parent=1 // loop_header_branch
      %16 = sbr.rel (%p14) target = $region8
    $region5: #{gcn_layer_forward.3} parent=1 // loop_body
      %s18 = ssub.s32 %s13, 1
      %s19 = ssub.s32 %s13, 2
      %s26 = sadd.s32 1, %s21
      %p27 = scmp.ge.s32.totalorder %s26, 2
      %s28 = scalar_select %p27, 0, %s26
      %s29 = sadd.s32 1, %s20
      %s30 = scalar_select %p27, %s29, %s20
      %p31 = scmp.ge.s32.totalorder %s30, 2
      %s32 = scalar_select %p31, 0, %s30
      %s33 = ssub.s32 %s20, %s32
      %s34 = ssub.s32 %s21, %s28
      %s35 = sor.u32 %s33, %s34
      %p36 = scmp.eq.s32.totalorder %s35, 0
      %s38 = sadd.s32 %s37, 1
      %s39 = scalar_select %p36, %s37, %s38
      %p42 = pneg %p36
      %p43 = scmp.eq.s32.totalorder %s13, 3
      %p44 = por %p42, %p43
      %p45 = scmp.ne.s32.totalorder %s37, %s40
      %p46 = scmp.eq.s32.totalorder %s13, 0
      %p47 = por %p45, %p46
      %p48 = scmp.ne.s32.totalorder %s37, %s40
      %p49 = scmp.eq.s32.totalorder %s18, 3
      %p50 = por %p48, %p49
      %p51 = scmp.ne.s32.totalorder %s40, %s41
      %p52 = scmp.eq.s32.totalorder %s18, 0
      %p53 = por %p51, %p52
      %p54 = scmp.ne.s32.totalorder %s40, %s41
      %p55 = scmp.eq.s32.totalorder %s19, 3
      %p56 = por %p54, %p55
      %p58 = scmp.ne.s32.totalorder %s41, %s57
      %p59 = scmp.eq.s32.totalorder %s19, 0
      %p60 = por %p58, %p59
      %s61 = ssub.s32 %s21, %s28
      %p62 = scmp.eq.s32.totalorder %s61, 0
      %s64 = sadd.s32 %s63, 1
      %s65 = scalar_select %p62, %s63, %s64
      %p68 = pneg %p62
      %p69 = scmp.eq.s32.totalorder %s13, 3
      %p70 = por %p68, %p69
      %p71 = scmp.ne.s32.totalorder %s63, %s66
      %p72 = scmp.eq.s32.totalorder %s13, 0
      %p73 = por %p71, %p72
      %p74 = scmp.ne.s32.totalorder %s63, %s66
      %p75 = scmp.eq.s32.totalorder %s18, 3
      %p76 = por %p74, %p75
      %p77 = scmp.ne.s32.totalorder %s66, %s67
      %p78 = scmp.eq.s32.totalorder %s18, 0
      %p79 = por %p77, %p78
      %p80 = scmp.ne.s32.totalorder %s66, %s67
      %p81 = scmp.eq.s32.totalorder %s19, 3
      %p82 = por %p80, %p81
      %p84 = scmp.ne.s32.totalorder %s67, %s83
      %p85 = scmp.eq.s32.totalorder %s19, 0
      %p86 = por %p84, %p85
      %s87 = ssub.s32 %s20, %s32
      %p88 = scmp.eq.s32.totalorder %s87, 0
      %s90 = sadd.s32 %s89, 1
      %s91 = scalar_select %p88, %s89, %s90
      %p94 = pneg %p88
      %p95 = scmp.eq.s32.totalorder %s13, 3
      %p96 = por %p94, %p95
      %p97 = scmp.ne.s32.totalorder %s89, %s92
      %p98 = scmp.eq.s32.totalorder %s13, 0
      %p99 = por %p97, %p98
      %p100 = scmp.ne.s32.totalorder %s89, %s92
      %p101 = scmp.eq.s32.totalorder %s18, 3
      %p102 = por %p100, %p101
      %p103 = scmp.ne.s32.totalorder %s92, %s93
      %p104 = scmp.eq.s32.totalorder %s18, 0
      %p105 = por %p103, %p104
      %p106 = scmp.ne.s32.totalorder %s92, %s93
      %p107 = scmp.eq.s32.totalorder %s19, 3
      %p108 = por %p106, %p107
      %p110 = scmp.ne.s32.totalorder %s93, %s109
      %p111 = scmp.eq.s32.totalorder %s19, 0
      %p112 = por %p110, %p111
      %s114 = sadd.s32 %s113, 1
      %p117 = scmp.eq.s32.totalorder %s13, 3
      %p118 = scmp.ne.s32.totalorder %s113, %s115
      %p119 = scmp.eq.s32.totalorder %s13, 0
      %p120 = por %p118, %p119
      %p121 = scmp.ne.s32.totalorder %s113, %s115
      %p122 = scmp.eq.s32.totalorder %s18, 3
      %p123 = por %p121, %p122
      %p124 = scmp.ne.s32.totalorder %s115, %s116
      %p125 = scmp.eq.s32.totalorder %s18, 0
      %p126 = por %p124, %p125
      %p127 = scmp.ne.s32.totalorder %s115, %s116
      %p128 = scmp.eq.s32.totalorder %s19, 3
      %p129 = por %p127, %p128
      %p131 = scmp.ne.s32.totalorder %s116, %s130
      %p132 = scmp.eq.s32.totalorder %s19, 0
      %p133 = por %p131, %p132
      %s135 = sadd.s32 %s134, 1
      %p138 = scmp.eq.s32.totalorder %s13, 3
      %p139 = scmp.ne.s32.totalorder %s134, %s136
      %p140 = scmp.eq.s32.totalorder %s13, 0
      %p141 = por %p139, %p140
      %p142 = scmp.ne.s32.totalorder %s134, %s136
      %p143 = scmp.eq.s32.totalorder %s18, 3
      %p144 = por %p142, %p143
      %p145 = scmp.ne.s32.totalorder %s136, %s137
      %p146 = scmp.eq.s32.totalorder %s18, 0
      %p147 = por %p145, %p146
      %p148 = scmp.ne.s32.totalorder %s136, %s137
      %p149 = scmp.eq.s32.totalorder %s19, 3
      %p150 = por %p148, %p149
      %p152 = scmp.ne.s32.totalorder %s137, %s151
      %p153 = scmp.eq.s32.totalorder %s19, 0
      %p154 = por %p152, %p153
      %s156 = sadd.s32 %s155, 1
      %p159 = scmp.eq.s32.totalorder %s13, 3
      %p160 = scmp.ne.s32.totalorder %s155, %s157
      %p161 = scmp.eq.s32.totalorder %s13, 0
      %p162 = por %p160, %p161
      %p163 = scmp.ne.s32.totalorder %s155, %s157
      %p164 = scmp.eq.s32.totalorder %s18, 3
      %p165 = por %p163, %p164
      %p166 = scmp.ne.s32.totalorder %s157, %s158
      %p167 = scmp.eq.s32.totalorder %s18, 0
      %p168 = por %p166, %p167
      %p169 = scmp.ne.s32.totalorder %s157, %s158
      %p170 = scmp.eq.s32.totalorder %s19, 3
      %p171 = por %p169, %p170
      %p173 = scmp.ne.s32.totalorder %s158, %s172
      %p174 = scmp.eq.s32.totalorder %s19, 0
      %p175 = por %p173, %p174
      %s177 = sadd.s32 %s176, 1
      %p180 = scmp.eq.s32.totalorder %s13, 3
      %p181 = scmp.ne.s32.totalorder %s176, %s178
      %p182 = scmp.eq.s32.totalorder %s13, 0
      %p183 = por %p181, %p182
      %p184 = scmp.ne.s32.totalorder %s176, %s178
      %p185 = scmp.eq.s32.totalorder %s18, 3
      %p186 = por %p184, %p185
      %p187 = scmp.ne.s32.totalorder %s178, %s179
      %p188 = scmp.eq.s32.totalorder %s18, 0
      %p189 = por %p187, %p188
      %p190 = scmp.ne.s32.totalorder %s178, %s179
      %p191 = scmp.eq.s32.totalorder %s19, 3
      %p192 = por %p190, %p191
      %p194 = scmp.ne.s32.totalorder %s179, %s193
      %p195 = scmp.eq.s32.totalorder %s19, 0
      %p196 = por %p194, %p195
      %s197 = ssub.s32 %s20, %s32
      %p198 = scmp.eq.s32.totalorder %s197, 0
      %s200 = sadd.s32 %s199, 1
      %s201 = scalar_select %p198, %s199, %s200
      %p204 = pneg %p198
      %p205 = scmp.eq.s32.totalorder %s13, 3
      %p206 = por %p204, %p205
      %p207 = scmp.ne.s32.totalorder %s199, %s202
      %p208 = scmp.eq.s32.totalorder %s13, 0
      %p209 = por %p207, %p208
      %p210 = scmp.ne.s32.totalorder %s199, %s202
      %p211 = scmp.eq.s32.totalorder %s18, 3
      %p212 = por %p210, %p211
      %p213 = scmp.ne.s32.totalorder %s202, %s203
      %p214 = scmp.eq.s32.totalorder %s18, 0
      %p215 = por %p213, %p214
      %p216 = scmp.ne.s32.totalorder %s202, %s203
      %p217 = scmp.eq.s32.totalorder %s19, 3
      %p218 = por %p216, %p217
      %p220 = scmp.ne.s32.totalorder %s203, %s219
      %p221 = scmp.eq.s32.totalorder %s19, 0
      %p222 = por %p220, %p221
      %p223 = scmp.le.s32.totalorder 1, %s13
      %p224 = scmp.lt.s32.totalorder %s13, 5
      %p225 = pnand %p223, %p224
      %p226 = pneg %p225
      // Predicated region
      $region9: #{gcn_layer_forward.3} parent=5 // pred_check
        _
      $region10: #{gcn_layer_forward.3} parent=5 // pred_check_branch
        %228 = sbr.rel (%p225) target = $region12
      $region11: #{gcn_layer_forward.3} parent=5 // pred_region
        %s229 = ssub.s32 %s13, 1
        // Predicated region
        $region13: #{gcn_layer_forward.3} parent=11 // pred_check
          %p230 = pneg %p126
        $region14: #{gcn_layer_forward.3} parent=11 // pred_check_branch
          %232 = sbr.rel (%p230) target = $region16
        $region15: #{gcn_layer_forward.3} parent=11 // pred_region
          _
        $region16: #{gcn_layer_forward.3} parent=11 // pred_fallthru
          _
        // Predicated region
        $region17: #{gcn_layer_forward.3} parent=11 // pred_check
          %p233 = pneg %p147
        $region18: #{gcn_layer_forward.3} parent=11 // pred_check_branch
          %235 = sbr.rel (%p233) target = $region20
        $region19: #{gcn_layer_forward.3} parent=11 // pred_region
          _
        $region20: #{gcn_layer_forward.3} parent=11 // pred_fallthru
          _
        // Predicated region
        $region21: #{gcn_layer_forward.3} parent=11 // pred_check
          %p236 = pneg %p168
        $region22: #{gcn_layer_forward.3} parent=11 // pred_check_branch
          %238 = sbr.rel (%p236) target = $region24
        $region23: #{gcn_layer_forward.3} parent=11 // pred_region
          _
        $region24: #{gcn_layer_forward.3} parent=11 // pred_fallthru
          _
        // Predicated region
        $region25: #{gcn_layer_forward.3} parent=11 // pred_check
          %p239 = pneg %p189
        $region26: #{gcn_layer_forward.3} parent=11 // pred_check_branch
          %241 = sbr.rel (%p239) target = $region28
        $region27: #{gcn_layer_forward.3} parent=11 // pred_region
          _
        $region28: #{gcn_layer_forward.3} parent=11 // pred_fallthru
          _
      $region12: #{gcn_layer_forward.3} parent=5 // pred_fallthru
        _
      %p242 = scmp.lt.s32.totalorder %s13, 4
      // Predicated region
      $region29: #{gcn_layer_forward.3} parent=5 // pred_check
        %p243 = pneg %p242
      $region30: #{gcn_layer_forward.3} parent=5 // pred_check_branch
        %245 = sbr.rel (%p243) target = $region32
      $region31: #{gcn_layer_forward.3} parent=5 // pred_region
        // Predicated region
        $region33: #{gcn_layer_forward.3} parent=31 // pred_check
          %p246 = pneg %p47
        $region34: #{gcn_layer_forward.3} parent=31 // pred_check_branch
          %248 = sbr.rel (%p246) target = $region36
        $region35: #{gcn_layer_forward.3} parent=31 // pred_region
          %s249 = sand.u32 %s37, 1
          %s250 = sand.u32 %s37, 1
          %s251 = smul.addr %s250, 64
          %s252 = scalar_lea.vmem [#allocation3], %s251
          %s253 = smul.u32 16, %s20
          %s254 = smul.addr %s253, 2
          %s255 = sadd.s32 %s21, %s254
          %s256 = smul.addr %s255, 4
          %s257 = scalar_lea.vmem %s0, %s256
          // Predicated region
          $region37: #{gcn_layer_forward.3} parent=35 // pred_check
            _
          $region38: #{gcn_layer_forward.3} parent=35 // pred_check_branch
            %259 = sbr.rel (0) target = $region40
          $region39: #{gcn_layer_forward.3} parent=35 // pred_region
            // Predicated region
            $region41: #{gcn_layer_forward.3} parent=39 // pred_check
              _
            $region42: #{gcn_layer_forward.3} parent=39 // pred_check_branch
              %261 = sbr.rel target = $region44
            $region43: #{gcn_layer_forward.3} parent=39 // pred_region
              // Predicated region
              $region56: #{gcn_layer_forward.3} parent=43 // pred_check
                _
              $region57: #{gcn_layer_forward.3} parent=43 // pred_check_branch
                %307 = sbr.rel (0) target = $region59
              $region58: #{gcn_layer_forward.3} parent=43 // pred_region
                loop: start=0, step=1, limit=1
                $region60: #{gcn_layer_forward.3} parent=58 // loop_pre_header
                  _
                $region61: #{gcn_layer_forward.3} parent=58 // loop_header
                  %s309 = sphi 0, %s313
                  %p310 = scmp.ge.s32.totalorder %s309, 1
                  %s314 = sphi %s257, %s257
                  %s315 = sphi %s252, %s252
                $region62: #{gcn_layer_forward.3} parent=58 // loop_header_branch
                  %312 = sbr.rel (%p310) target = $region66
                $region63: #{gcn_layer_forward.3} parent=58 // loop_body
                  _
                $region64: #{gcn_layer_forward.3} parent=58 // loop_footer
                  %s313 = sadd.s32 1, %s309
                $region65: #{gcn_layer_forward.3} parent=58 // loop_footer_branch
                  %308 = sbr.rel target = $region61
                $region66: #{gcn_layer_forward.3} parent=58 // loop_exit
                  _
                %s317 = ssub.s32 16, 1
                loop: start=0, step=1, limit=1
                $region67: #{gcn_layer_forward.3} parent=58 // loop_pre_header
                  _
                $region68: #{gcn_layer_forward.3} parent=58 // loop_header
                  %s319 = sphi 0, %s323
                  %p320 = scmp.ge.s32.totalorder %s319, 1
                  %s324 = sphi %s257, %s257
                  %s325 = sphi %s252, %s252
                $region69: #{gcn_layer_forward.3} parent=58 // loop_header_branch
                  %322 = sbr.rel (%p320) target = $region73
                $region70: #{gcn_layer_forward.3} parent=58 // loop_body
                  %v326 = vld [vmem:[%s324] sm:%s317]
                  %327 = vst [vmem:[%s325] sm:%s317] %v326
                  %v328 = vld [vmem:[%s324 + $0x8] sm:%s317]
                  %329 = vst [vmem:[%s325 + $0x4] sm:%s317] %v328
                  %v330 = vld [vmem:[%s324 + $0x10] sm:%s317]
                  %331 = vst [vmem:[%s325 + $0x8] sm:%s317] %v330
                  %v332 = vld [vmem:[%s324 + $0x18] sm:%s317]
                  %333 = vst [vmem:[%s325 + $0xc] sm:%s317] %v332
                  %v334 = vld [vmem:[%s324 + $0x20] sm:%s317]
                  %335 = vst [vmem:[%s325 + $0x10] sm:%s317] %v334
                  %v336 = vld [vmem:[%s324 + $0x28] sm:%s317]
                  %337 = vst [vmem:[%s325 + $0x14] sm:%s317] %v336
                  %v338 = vld [vmem:[%s324 + $0x30] sm:%s317]
                  %339 = vst [vmem:[%s325 + $0x18] sm:%s317] %v338
                  %v340 = vld [vmem:[%s324 + $0x38] sm:%s317]
                  %341 = vst [vmem:[%s325 + $0x1c] sm:%s317] %v340
                  %v342 = vld [vmem:[%s324 + $0x40] sm:%s317]
                  %343 = vst [vmem:[%s325 + $0x20] sm:%s317] %v342
                  %v344 = vld [vmem:[%s324 + $0x48] sm:%s317]
                  %345 = vst [vmem:[%s325 + $0x24] sm:%s317] %v344
                  %v346 = vld [vmem:[%s324 + $0x50] sm:%s317]
                  %347 = vst [vmem:[%s325 + $0x28] sm:%s317] %v346
                  %v348 = vld [vmem:[%s324 + $0x58] sm:%s317]
                  %349 = vst [vmem:[%s325 + $0x2c] sm:%s317] %v348
                  %v350 = vld [vmem:[%s324 + $0x60] sm:%s317]
                  %351 = vst [vmem:[%s325 + $0x30] sm:%s317] %v350
                  %v352 = vld [vmem:[%s324 + $0x68] sm:%s317]
                  %353 = vst [vmem:[%s325 + $0x34] sm:%s317] %v352
                  %v354 = vld [vmem:[%s324 + $0x70] sm:%s317]
                  %355 = vst [vmem:[%s325 + $0x38] sm:%s317] %v354
                  %v356 = vld [vmem:[%s324 + $0x78] sm:%s317]
                  %357 = vst [vmem:[%s325 + $0x3c] sm:%s317] %v356
                $region71: #{gcn_layer_forward.3} parent=58 // loop_footer
                  %s323 = sadd.s32 1, %s319
                $region72: #{gcn_layer_forward.3} parent=58 // loop_footer_branch
                  %318 = sbr.rel target = $region68
                $region73: #{gcn_layer_forward.3} parent=58 // loop_exit
                  _
              $region59: #{gcn_layer_forward.3} parent=43 // pred_fallthru
                _
            $region44: #{gcn_layer_forward.3} parent=39 // pred_fallthru
              _
            // Predicated region
            $region45: #{gcn_layer_forward.3} parent=39 // pred_check
              _
            $region46: #{gcn_layer_forward.3} parent=39 // pred_check_branch
              %263 = sbr.rel (0) target = $region48
            $region47: #{gcn_layer_forward.3} parent=39 // pred_region
              %s265 = ssub.s32 16, 1
              loop: start=0, step=1, limit=1
              $region49: #{gcn_layer_forward.3} parent=47 // loop_pre_header
                _
              $region50: #{gcn_layer_forward.3} parent=47 // loop_header
                %s267 = sphi 0, %s271
                %p268 = scmp.ge.s32.totalorder %s267, 1
                %s272 = sphi %s257, %s257
                %s273 = sphi %s252, %s252
              $region51: #{gcn_layer_forward.3} parent=47 // loop_header_branch
                %270 = sbr.rel (%p268) target = $region55
              $region52: #{gcn_layer_forward.3} parent=47 // loop_body
                %v274 = vld [vmem:[%s272] sm:%s265]
                %275 = vst [vmem:[%s273] sm:%s265] %v274
                %v276 = vld [vmem:[%s272 + $0x8] sm:%s265]
                %277 = vst [vmem:[%s273 + $0x4] sm:%s265] %v276
                %v278 = vld [vmem:[%s272 + $0x10] sm:%s265]
                %279 = vst [vmem:[%s273 + $0x8] sm:%s265] %v278
                %v280 = vld [vmem:[%s272 + $0x18] sm:%s265]
                %281 = vst [vmem:[%s273 + $0xc] sm:%s265] %v280
                %v282 = vld [vmem:[%s272 + $0x20] sm:%s265]
                %283 = vst [vmem:[%s273 + $0x10] sm:%s265] %v282
                %v284 = vld [vmem:[%s272 + $0x28] sm:%s265]
                %285 = vst [vmem:[%s273 + $0x14] sm:%s265] %v284
                %v286 = vld [vmem:[%s272 + $0x30] sm:%s265]
                %287 = vst [vmem:[%s273 + $0x18] sm:%s265] %v286
                %v288 = vld [vmem:[%s272 + $0x38] sm:%s265]
                %289 = vst [vmem:[%s273 + $0x1c] sm:%s265] %v288
                %v290 = vld [vmem:[%s272 + $0x40] sm:%s265]
                %291 = vst [vmem:[%s273 + $0x20] sm:%s265] %v290
                %v292 = vld [vmem:[%s272 + $0x48] sm:%s265]
                %293 = vst [vmem:[%s273 + $0x24] sm:%s265] %v292
                %v294 = vld [vmem:[%s272 + $0x50] sm:%s265]
                %295 = vst [vmem:[%s273 + $0x28] sm:%s265] %v294
                %v296 = vld [vmem:[%s272 + $0x58] sm:%s265]
                %297 = vst [vmem:[%s273 + $0x2c] sm:%s265] %v296
                %v298 = vld [vmem:[%s272 + $0x60] sm:%s265]
                %299 = vst [vmem:[%s273 + $0x30] sm:%s265] %v298
                %v300 = vld [vmem:[%s272 + $0x68] sm:%s265]
                %301 = vst [vmem:[%s273 + $0x34] sm:%s265] %v300
                %v302 = vld [vmem:[%s272 + $0x70] sm:%s265]
                %303 = vst [vmem:[%s273 + $0x38] sm:%s265] %v302
                %v304 = vld [vmem:[%s272 + $0x78] sm:%s265]
                %305 = vst [vmem:[%s273 + $0x3c] sm:%s265] %v304
              $region53: #{gcn_layer_forward.3} parent=47 // loop_footer
                %s271 = sadd.s32 1, %s267
              $region54: #{gcn_layer_forward.3} parent=47 // loop_footer_branch
                %266 = sbr.rel target = $region50
              $region55: #{gcn_layer_forward.3} parent=47 // loop_exit
                _
            $region48: #{gcn_layer_forward.3} parent=39 // pred_fallthru
              _
          $region40: #{gcn_layer_forward.3} parent=35 // pred_fallthru
            _
          %358 = vnop
        $region36: #{gcn_layer_forward.3} parent=31 // pred_fallthru
          _
        // Predicated region
        $region74: #{gcn_layer_forward.3} parent=31 // pred_check
          %p359 = pneg %p73
        $region75: #{gcn_layer_forward.3} parent=31 // pred_check_branch
          %361 = sbr.rel (%p359) target = $region77
        $region76: #{gcn_layer_forward.3} parent=31 // pred_region
          %s362 = smul.u32 16, %s21
          %p363 = scmp.lt.s32.totalorder %s362, 31
          %s364 = scalar_select %p363, %s362, 31
          %s365 = smul.addr %s364, 8
          %s366 = scalar_lea.vmem %s1, %s365
          %s367 = smul.u32 16, %s21
        $region77: #{gcn_layer_forward.3} parent=31 // pred_fallthru
          _
        // Predicated region
        $region78: #{gcn_layer_forward.3} parent=31 // pred_check
          %p368 = pneg %p99
        $region79: #{gcn_layer_forward.3} parent=31 // pred_check_branch
          %370 = sbr.rel (%p368) target = $region81
        $region80: #{gcn_layer_forward.3} parent=31 // pred_region
          %s371 = smul.u32 16, %s20
          %p372 = scmp.lt.s32.totalorder %s371, 31
          %s373 = scalar_select %p372, %s371, 31
          %s374 = smul.addr %s373, 8
          %s375 = scalar_lea.vmem %s2, %s374
          %s376 = smul.u32 16, %s20
        $region81: #{gcn_layer_forward.3} parent=31 // pred_fallthru
          _
      $region32: #{gcn_layer_forward.3} parent=5 // pred_fallthru
        _
      %p377 = scmp.le.s32.totalorder 1, %s13
      %p378 = scmp.lt.s32.totalorder %s13, 5
      %p379 = pnand %p377, %p378
      %p380 = pneg %p379
      // Predicated region
      $region82: #{gcn_layer_forward.3} parent=5 // pred_check
        _
      $region83: #{gcn_layer_forward.3} parent=5 // pred_check_branch
        %382 = sbr.rel (%p379) target = $region85
      $region84: #{gcn_layer_forward.3} parent=5 // pred_region
        %s383 = ssub.s32 %s13, 1
        %s384 = sand.u32 %s40, 1
        %s385 = sand.u32 %s40, 1
        %s386 = smul.addr %s385, 64
        %s387 = scalar_lea.vmem [#allocation3], %s386
        // Predicated region
        $region86: #{gcn_layer_forward.3} parent=84 // pred_check
          %p388 = pneg %p53
        $region87: #{gcn_layer_forward.3} parent=84 // pred_check_branch
          %390 = sbr.rel (%p388) target = $region89
        $region88: #{gcn_layer_forward.3} parent=84 // pred_region
          _
        $region89: #{gcn_layer_forward.3} parent=84 // pred_fallthru
          _
        %s391 = sand.u32 %s40, 1
        %s392 = sand.u32 %s40, 1
        %s393 = smul.addr %s392, 64
        %s394 = scalar_lea.vmem [#allocation3], %s393
        %p395 = pneg %p53
        %p396 = pneg %p50
        %s397 = smul.u32 16, %s23
        %p398 = scmp.lt.s32.totalorder %s397, 31
        %s399 = scalar_select %p398, %s397, 31
        %s400 = smul.addr %s399, 8
        %s401 = scalar_lea.vmem %s1, %s400
        %p402 = pneg %p79
        %p403 = pneg %p76
        %s404 = smul.u32 16, %s22
        %p405 = scmp.lt.s32.totalorder %s404, 31
        %s406 = scalar_select %p405, %s404, 31
        %s407 = smul.addr %s406, 8
        %s408 = scalar_lea.vmem %s2, %s407
        %p409 = pneg %p105
        %p410 = pneg %p102
        %p411 = pneg %p126
        %p412 = pneg %p123
        %p413 = pneg %p147
        %p414 = pneg %p144
        %p415 = pneg %p168
        %p416 = pneg %p165
        %p417 = pneg %p189
        %p418 = pneg %p186
        %p419 = pneg %p215
        %p420 = pneg %p212
        %s421 = smul.u32 16, %s22
        %p422 = scmp.lt.s32.totalorder %s421, 31
        %s423 = scalar_select %p422, %s421, 31
        %s424 = smul.addr %s423, 8
        %s425 = scalar_lea.vmem %s7, %s424
        %s426 = smul.u32 16, %s22
        %s427 = smul.u32 16, %s23
        %p428 = scmp.lt.s32.totalorder %s427, 31
        %s429 = scalar_select %p428, %s427, 31
        %s430 = smul.addr %s429, 8
        %s431 = scalar_lea.vmem %s1, %s430
        %s432 = smul.u32 16, %s23
        %s433 = smul.u32 16, %s22
        %p434 = scmp.lt.s32.totalorder %s433, 31
        %s435 = scalar_select %p434, %s433, 31
        %s436 = smul.addr %s435, 8
        %s437 = scalar_lea.vmem %s2, %s436
        %s438 = smul.u32 16, %s22
        %s439 = smul.u32 16, %s22
        %p440 = scmp.lt.s32.totalorder %s439, 31
        %s441 = scalar_select %p440, %s439, 31
        %s442 = smul.addr %s441, 8
        %s443 = scalar_lea.vmem %s7, %s442
        %s444 = smul.u32 16, %s22
        %p445 = scmp.eq.s32.totalorder %s23, 0
        // Predicated region
        $region90: #{gcn_layer_forward.3} parent=84 // pred_check
          %p446 = pneg %p445
        $region91: #{gcn_layer_forward.3} parent=84 // pred_check_branch
          %448 = sbr.rel (%p446) target = $region93
        $region92: #{gcn_layer_forward.3} parent=84 // pred_region
          %449 = vst [vmem:[#allocation2] sm:$0xff] 0.0
          %450 = vst [vmem:[#allocation2 + $0x8] sm:$0xff] 0.0
          %451 = vst [vmem:[#allocation2 + $0x10] sm:$0xff] 0.0
          %452 = vst [vmem:[#allocation2 + $0x18] sm:$0xff] 0.0
          %453 = vst [vmem:[#allocation2 + $0x20] sm:$0xff] 0.0
          %454 = vst [vmem:[#allocation2 + $0x28] sm:$0xff] 0.0
          %455 = vst [vmem:[#allocation2 + $0x30] sm:$0xff] 0.0
          %456 = vst [vmem:[#allocation2 + $0x38] sm:$0xff] 0.0
          %457 = vst [vmem:[#allocation2 + $0x40] sm:$0xff] 0.0
          %458 = vst [vmem:[#allocation2 + $0x48] sm:$0xff] 0.0
          %459 = vst [vmem:[#allocation2 + $0x50] sm:$0xff] 0.0
          %460 = vst [vmem:[#allocation2 + $0x58] sm:$0xff] 0.0
          %461 = vst [vmem:[#allocation2 + $0x60] sm:$0xff] 0.0
          %462 = vst [vmem:[#allocation2 + $0x68] sm:$0xff] 0.0
          %463 = vst [vmem:[#allocation2 + $0x70] sm:$0xff] 0.0
          %464 = vst [vmem:[#allocation2 + $0x78] sm:$0xff] 0.0
        $region93: #{gcn_layer_forward.3} parent=84 // pred_fallthru
          _
        %v465 = vld [vmem:[#allocation2] sm:$0xff]
        %v466 = vld [vmem:[#allocation2 + $0x8] sm:$0xff]
        %v467 = vld [vmem:[#allocation2 + $0x10] sm:$0xff]
        %v468 = vld [vmem:[#allocation2 + $0x18] sm:$0xff]
        %v469 = vld [vmem:[#allocation2 + $0x20] sm:$0xff]
        %v470 = vld [vmem:[#allocation2 + $0x28] sm:$0xff]
        %v471 = vld [vmem:[#allocation2 + $0x30] sm:$0xff]
        %v472 = vld [vmem:[#allocation2 + $0x38] sm:$0xff]
        %v473 = vld [vmem:[#allocation2 + $0x40] sm:$0xff]
        %v474 = vld [vmem:[#allocation2 + $0x48] sm:$0xff]
        %v475 = vld [vmem:[#allocation2 + $0x50] sm:$0xff]
        %v476 = vld [vmem:[#allocation2 + $0x58] sm:$0xff]
        %v477 = vld [vmem:[#allocation2 + $0x60] sm:$0xff]
        %v478 = vld [vmem:[#allocation2 + $0x68] sm:$0xff]
        %v479 = vld [vmem:[#allocation2 + $0x70] sm:$0xff]
        %v480 = vld [vmem:[#allocation2 + $0x78] sm:$0xff]
        %v481 = vld [vmem:[%s387] sm:$0xf]
        %v482 = vld [vmem:[%s387 + $0x4] sm:$0xf]
        %v483 = vld [vmem:[%s387 + $0x8] sm:$0xf]
        %v484 = vld [vmem:[%s387 + $0xc] sm:$0xf]
        %v485 = vld [vmem:[%s387 + $0x10] sm:$0xf]
        %v486 = vld [vmem:[%s387 + $0x14] sm:$0xf]
        %v487 = vld [vmem:[%s387 + $0x18] sm:$0xf]
        %v488 = vld [vmem:[%s387 + $0x1c] sm:$0xf]
        %v489 = vld [vmem:[%s387 + $0x20] sm:$0xf]
        %v490 = vld [vmem:[%s387 + $0x24] sm:$0xf]
        %v491 = vld [vmem:[%s387 + $0x28] sm:$0xf]
        %v492 = vld [vmem:[%s387 + $0x2c] sm:$0xf]
        %v493 = vld [vmem:[%s387 + $0x30] sm:$0xf]
        %v494 = vld [vmem:[%s387 + $0x34] sm:$0xf]
        %v495 = vld [vmem:[%s387 + $0x38] sm:$0xf]
        %v496 = vld [vmem:[%s387 + $0x3c] sm:$0xf]
        %v497 = vunpack.c.l.bf16 %v481
        %v498 = vunpack.c.l.bf16 %v482
        %v499 = vunpack.c.l.bf16 %v483
        %v500 = vunpack.c.l.bf16 %v484
        %v501 = vunpack.c.l.bf16 %v485
        %v502 = vunpack.c.l.bf16 %v486
        %v503 = vunpack.c.l.bf16 %v487
        %v504 = vunpack.c.l.bf16 %v488
        %v505 = vunpack.c.l.bf16 %v489
        %v506 = vunpack.c.l.bf16 %v490
        %v507 = vunpack.c.l.bf16 %v491
        %v508 = vunpack.c.l.bf16 %v492
        %v509 = vunpack.c.l.bf16 %v493
        %v510 = vunpack.c.l.bf16 %v494
        %v511 = vunpack.c.l.bf16 %v495
        %v512 = vunpack.c.l.bf16 %v496
        %v513 = vld [vmem:[%s431] sm:$0xff]
        %v514 = vld [vmem:[%s431 + $0x8] sm:$0xff]
        %v515 = vld [vmem:[%s431 + $0x10] sm:$0xff]
        %v516 = vld [vmem:[%s431 + $0x18] sm:$0xff]
        %v517 = vld [vmem:[%s431 + $0x20] sm:$0xff]
        %v518 = vld [vmem:[%s431 + $0x28] sm:$0xff]
        %v519 = vld [vmem:[%s431 + $0x30] sm:$0xff]
        %v520 = vld [vmem:[%s431 + $0x38] sm:$0xff]
        %v521 = vld [vmem:[%s431 + $0x40] sm:$0xff]
        %v522 = vld [vmem:[%s431 + $0x48] sm:$0xff]
        %v523 = vld [vmem:[%s431 + $0x50] sm:$0xff]
        %v524 = vld [vmem:[%s431 + $0x58] sm:$0xff]
        %v525 = vld [vmem:[%s431 + $0x60] sm:$0xff]
        %v526 = vld [vmem:[%s431 + $0x68] sm:$0xff]
        %v527 = vld [vmem:[%s431 + $0x70] sm:$0xff]
        %v528 = vld [vmem:[%s431 + $0x78] sm:$0xff]
        %529 = vmatprep.subr.mxu0 0.0
        %530 = vmatpush1.msra.mxu0 %v528
        %531 = vmatprep.subr.mxu0 0.0
        %532 = vmatpush1.msra.mxu0 %v527
        %533 = vmatprep.subr.mxu0 0.0
        %534 = vmatpush1.msra.mxu0 %v526
        %535 = vmatprep.subr.mxu0 0.0
        %536 = vmatpush1.msra.mxu0 %v525
        %537 = vmatprep.subr.mxu0 0.0
        %538 = vmatpush1.msra.mxu0 %v524
        %539 = vmatprep.subr.mxu0 0.0
        %540 = vmatpush1.msra.mxu0 %v523
        %541 = vmatprep.subr.mxu0 0.0
        %542 = vmatpush1.msra.mxu0 %v522
        %543 = vmatprep.subr.mxu0 0.0
        %544 = vmatpush1.msra.mxu0 %v521
        %545 = vmatprep.subr.mxu0 0.0
        %546 = vmatpush1.msra.mxu0 %v520
        %547 = vmatprep.subr.mxu0 0.0
        %548 = vmatpush1.msra.mxu0 %v519
        %549 = vmatprep.subr.mxu0 0.0
        %550 = vmatpush1.msra.mxu0 %v518
        %551 = vmatprep.subr.mxu0 0.0
        %552 = vmatpush1.msra.mxu0 %v517
        %553 = vmatprep.subr.mxu0 0.0
        %554 = vmatpush1.msra.mxu0 %v516
        %555 = vmatprep.subr.mxu0 0.0
        %556 = vmatpush1.msra.mxu0 %v515
        %557 = vmatprep.subr.mxu0 0.0
        %558 = vmatpush1.msra.mxu0 %v514
        %559 = vmatprep.subr.mxu0 0.0
        %560 = vmatpush1.msra.mxu0 %v513
        %561 = vmatprep.subr.mxu0 0.0
        %562 = vmatpush2.msra.mxu0 0.0
        %563 = vmatprep.subr.mxu0 0.0
        %564 = vmatpush2.msra.mxu0 0.0
        %565 = vmatprep.subr.mxu0 0.0
        %566 = vmatpush2.msra.mxu0 0.0
        %567 = vmatprep.subr.mxu0 0.0
        %568 = vmatpush2.msra.mxu0 0.0
        %569 = vmatprep.subr.mxu0 0.0
        %570 = vmatpush2.msra.mxu0 0.0
        %571 = vmatprep.subr.mxu0 0.0
        %572 = vmatpush2.msra.mxu0 0.0
        %573 = vmatprep.subr.mxu0 0.0
        %574 = vmatpush2.msra.mxu0 0.0
        %575 = vmatprep.subr.mxu0 0.0
        %576 = vmatpush2.msra.mxu0 0.0
        %577 = vmatprep.subr.mxu0 0.0
        %578 = vmatpush2.msra.mxu0 0.0
        %579 = vmatprep.subr.mxu0 0.0
        %580 = vmatpush2.msra.mxu0 0.0
        %581 = vmatprep.subr.mxu0 0.0
        %582 = vmatpush2.msra.mxu0 0.0
        %583 = vmatprep.subr.mxu0 0.0
        %584 = vmatpush2.msra.mxu0 0.0
        %585 = vmatprep.subr.mxu0 0.0
        %586 = vmatpush2.msra.mxu0 0.0
        %587 = vmatprep.subr.mxu0 0.0
        %588 = vmatpush2.msra.mxu0 0.0
        %589 = vmatprep.subr.mxu0 0.0
        %590 = vmatpush2.msra.mxu0 0.0
        %591 = vmatprep.subr.mxu0 0.0
        %592 = vmatpush2.msra.mxu0 0.0
        %593 = vmatprep.mubr.f32.mxu0 0.0
        %594 = vmatmul.mubr.f32.gmra.mxu0 %v497
        %v595 = vpop.f32.mrf.mxu0
        %v596 = vadd.f32 0.0, %v595
        %v597 = vpop.f32.mrf.mxu0
        %598 = vmatprep.mubr.f32.mxu0 0.0
        %599 = vmatmul.mubr.f32.gmra.mxu0 %v498
        %v600 = vpop.f32.mrf.mxu0
        %v601 = vadd.f32 0.0, %v600
        %v602 = vpop.f32.mrf.mxu0
        %603 = vmatprep.mubr.f32.mxu0 0.0
        %604 = vmatmul.mubr.f32.gmra.mxu0 %v499
        %v605 = vpop.f32.mrf.mxu0
        %v606 = vadd.f32 0.0, %v605
        %v607 = vpop.f32.mrf.mxu0
        %608 = vmatprep.mubr.f32.mxu0 0.0
        %609 = vmatmul.mubr.f32.gmra.mxu0 %v500
        %v610 = vpop.f32.mrf.mxu0
        %v611 = vadd.f32 0.0, %v610
        %v612 = vpop.f32.mrf.mxu0
        %613 = vmatprep.mubr.f32.mxu0 0.0
        %614 = vmatmul.mubr.f32.gmra.mxu0 %v501
        %v615 = vpop.f32.mrf.mxu0
        %v616 = vadd.f32 0.0, %v615
        %v617 = vpop.f32.mrf.mxu0
        %618 = vmatprep.mubr.f32.mxu0 0.0
        %619 = vmatmul.mubr.f32.gmra.mxu0 %v502
        %v620 = vpop.f32.mrf.mxu0
        %v621 = vadd.f32 0.0, %v620
        %v622 = vpop.f32.mrf.mxu0
        %623 = vmatprep.mubr.f32.mxu0 0.0
        %624 = vmatmul.mubr.f32.gmra.mxu0 %v503
        %v625 = vpop.f32.mrf.mxu0
        %v626 = vadd.f32 0.0, %v625
        %v627 = vpop.f32.mrf.mxu0
        %628 = vmatprep.mubr.f32.mxu0 0.0
        %629 = vmatmul.mubr.f32.gmra.mxu0 %v504
        %v630 = vpop.f32.mrf.mxu0
        %v631 = vadd.f32 0.0, %v630
        %v632 = vpop.f32.mrf.mxu0
        %633 = vmatprep.mubr.f32.mxu0 0.0
        %634 = vmatmul.mubr.f32.gmra.mxu0 %v505
        %v635 = vpop.f32.mrf.mxu0
        %v636 = vadd.f32 0.0, %v635
        %v637 = vpop.f32.mrf.mxu0
        %638 = vmatprep.mubr.f32.mxu0 0.0
        %639 = vmatmul.mubr.f32.gmra.mxu0 %v506
        %v640 = vpop.f32.mrf.mxu0
        %v641 = vadd.f32 0.0, %v640
        %v642 = vpop.f32.mrf.mxu0
        %643 = vmatprep.mubr.f32.mxu0 0.0
        %644 = vmatmul.mubr.f32.gmra.mxu0 %v507
        %v645 = vpop.f32.mrf.mxu0
        %v646 = vadd.f32 0.0, %v645
        %v647 = vpop.f32.mrf.mxu0
        %648 = vmatprep.mubr.f32.mxu0 0.0
        %649 = vmatmul.mubr.f32.gmra.mxu0 %v508
        %v650 = vpop.f32.mrf.mxu0
        %v651 = vadd.f32 0.0, %v650
        %v652 = vpop.f32.mrf.mxu0
        %653 = vmatprep.mubr.f32.mxu0 0.0
        %654 = vmatmul.mubr.f32.gmra.mxu0 %v509
        %v655 = vpop.f32.mrf.mxu0
        %v656 = vadd.f32 0.0, %v655
        %v657 = vpop.f32.mrf.mxu0
        %658 = vmatprep.mubr.f32.mxu0 0.0
        %659 = vmatmul.mubr.f32.gmra.mxu0 %v510
        %v660 = vpop.f32.mrf.mxu0
        %v661 = vadd.f32 0.0, %v660
        %v662 = vpop.f32.mrf.mxu0
        %663 = vmatprep.mubr.f32.mxu0 0.0
        %664 = vmatmul.mubr.f32.gmra.mxu0 %v511
        %v665 = vpop.f32.mrf.mxu0
        %v666 = vadd.f32 0.0, %v665
        %v667 = vpop.f32.mrf.mxu0
        %668 = vmatprep.mubr.f32.mxu0 0.0
        %669 = vmatmul.mubr.f32.gmra.mxu0 %v512
        %v670 = vpop.f32.mrf.mxu0
        %v671 = vadd.f32 0.0, %v670
        %v672 = vpop.f32.mrf.mxu0
        %673 = vdwg.mxu0
        %v674 = vadd.f32 %v465, %v596
        %v675 = vadd.f32 %v466, %v601
        %v676 = vadd.f32 %v467, %v606
        %v677 = vadd.f32 %v468, %v611
        %v678 = vadd.f32 %v469, %v616
        %v679 = vadd.f32 %v470, %v621
        %v680 = vadd.f32 %v471, %v626
        %v681 = vadd.f32 %v472, %v631
        %v682 = vadd.f32 %v473, %v636
        %v683 = vadd.f32 %v474, %v641
        %v684 = vadd.f32 %v475, %v646
        %v685 = vadd.f32 %v476, %v651
        %v686 = vadd.f32 %v477, %v656
        %v687 = vadd.f32 %v478, %v661
        %v688 = vadd.f32 %v479, %v666
        %v689 = vadd.f32 %v480, %v671
        %690 = vst [vmem:[#allocation2] sm:$0xff] %v674
        %691 = vst [vmem:[#allocation2 + $0x8] sm:$0xff] %v675
        %692 = vst [vmem:[#allocation2 + $0x10] sm:$0xff] %v676
        %693 = vst [vmem:[#allocation2 + $0x18] sm:$0xff] %v677
        %694 = vst [vmem:[#allocation2 + $0x20] sm:$0xff] %v678
        %695 = vst [vmem:[#allocation2 + $0x28] sm:$0xff] %v679
        %696 = vst [vmem:[#allocation2 + $0x30] sm:$0xff] %v680
        %697 = vst [vmem:[#allocation2 + $0x38] sm:$0xff] %v681
        %698 = vst [vmem:[#allocation2 + $0x40] sm:$0xff] %v682
        %699 = vst [vmem:[#allocation2 + $0x48] sm:$0xff] %v683
        %700 = vst [vmem:[#allocation2 + $0x50] sm:$0xff] %v684
        %701 = vst [vmem:[#allocation2 + $0x58] sm:$0xff] %v685
        %702 = vst [vmem:[#allocation2 + $0x60] sm:$0xff] %v686
        %703 = vst [vmem:[#allocation2 + $0x68] sm:$0xff] %v687
        %704 = vst [vmem:[#allocation2 + $0x70] sm:$0xff] %v688
        %705 = vst [vmem:[#allocation2 + $0x78] sm:$0xff] %v689
        %p706 = scmp.eq.s32.totalorder %s23, 1
        // Predicated region
        $region94: #{gcn_layer_forward.3} parent=84 // pred_check
          %p707 = pneg %p706
        $region95: #{gcn_layer_forward.3} parent=84 // pred_check_branch
          %709 = sbr.rel (%p707) target = $region97
        $region96: #{gcn_layer_forward.3} parent=84 // pred_region
          %v710 = vld [vmem:[#allocation2] sm:$0xff]
          %v711 = vld [vmem:[#allocation2 + $0x8] sm:$0xff]
          %v712 = vld [vmem:[#allocation2 + $0x10] sm:$0xff]
          %v713 = vld [vmem:[#allocation2 + $0x18] sm:$0xff]
          %v714 = vld [vmem:[#allocation2 + $0x20] sm:$0xff]
          %v715 = vld [vmem:[#allocation2 + $0x28] sm:$0xff]
          %v716 = vld [vmem:[#allocation2 + $0x30] sm:$0xff]
          %v717 = vld [vmem:[#allocation2 + $0x38] sm:$0xff]
          %v718 = vld [vmem:[#allocation2 + $0x40] sm:$0xff]
          %v719 = vld [vmem:[#allocation2 + $0x48] sm:$0xff]
          %v720 = vld [vmem:[#allocation2 + $0x50] sm:$0xff]
          %v721 = vld [vmem:[#allocation2 + $0x58] sm:$0xff]
          %v722 = vld [vmem:[#allocation2 + $0x60] sm:$0xff]
          %v723 = vld [vmem:[#allocation2 + $0x68] sm:$0xff]
          %v724 = vld [vmem:[#allocation2 + $0x70] sm:$0xff]
          %v725 = vld [vmem:[#allocation2 + $0x78] sm:$0xff]
          %v726 = vld [vmem:[%s3] sm:$0xff]
          %v727 = vld [vmem:[%s3 + $0x8] sm:$0xff]
          %v728 = vld [vmem:[%s3 + $0x10] sm:$0xff]
          %v729 = vld [vmem:[%s3 + $0x18] sm:$0xff]
          %v730 = vld [vmem:[%s3 + $0x20] sm:$0xff]
          %v731 = vld [vmem:[%s3 + $0x28] sm:$0xff]
          %v732 = vld [vmem:[%s3 + $0x30] sm:$0xff]
          %v733 = vld [vmem:[%s3 + $0x38] sm:$0xff]
          %v734 = vld [vmem:[%s3 + $0x40] sm:$0xff]
          %v735 = vld [vmem:[%s3 + $0x48] sm:$0xff]
          %v736 = vld [vmem:[%s3 + $0x50] sm:$0xff]
          %v737 = vld [vmem:[%s3 + $0x58] sm:$0xff]
          %v738 = vld [vmem:[%s3 + $0x60] sm:$0xff]
          %v739 = vld [vmem:[%s3 + $0x68] sm:$0xff]
          %v740 = vld [vmem:[%s3 + $0x70] sm:$0xff]
          %v741 = vld [vmem:[%s3 + $0x78] sm:$0xff]
          %v742 = vld [vmem:[%s4] sm:$0x1]
          %v744 = vlaneseq
          %v745 = vshrl.u32 %v744, 7
          %v746 = vsub.s32 0, %v745
          %v747 = vrot.slane %v742, %v746
          %749 = vmatprep.subr.mxu0 0.0
          %750 = vmatpush1.msra.mxu0 %v741
          %751 = vmatprep.subr.mxu0 0.0
          %752 = vmatpush1.msra.mxu0 %v740
          %753 = vmatprep.subr.mxu0 0.0
          %754 = vmatpush1.msra.mxu0 %v739
          %755 = vmatprep.subr.mxu0 0.0
          %756 = vmatpush1.msra.mxu0 %v738
          %757 = vmatprep.subr.mxu0 0.0
          %758 = vmatpush1.msra.mxu0 %v737
          %759 = vmatprep.subr.mxu0 0.0
          %760 = vmatpush1.msra.mxu0 %v736
          %761 = vmatprep.subr.mxu0 0.0
          %762 = vmatpush1.msra.mxu0 %v735
          %763 = vmatprep.subr.mxu0 0.0
          %764 = vmatpush1.msra.mxu0 %v734
          %765 = vmatprep.subr.mxu0 0.0
          %766 = vmatpush1.msra.mxu0 %v733
          %767 = vmatprep.subr.mxu0 0.0
          %768 = vmatpush1.msra.mxu0 %v732
          %769 = vmatprep.subr.mxu0 0.0
          %770 = vmatpush1.msra.mxu0 %v731
          %771 = vmatprep.subr.mxu0 0.0
          %772 = vmatpush1.msra.mxu0 %v730
          %773 = vmatprep.subr.mxu0 0.0
          %774 = vmatpush1.msra.mxu0 %v729
          %775 = vmatprep.subr.mxu0 0.0
          %776 = vmatpush1.msra.mxu0 %v728
          %777 = vmatprep.subr.mxu0 0.0
          %778 = vmatpush1.msra.mxu0 %v727
          %779 = vmatprep.subr.mxu0 0.0
          %780 = vmatpush1.msra.mxu0 %v726
          %781 = vmatprep.subr.mxu0 0.0
          %782 = vmatpush2.msra.mxu0 0.0
          %783 = vmatprep.subr.mxu0 0.0
          %784 = vmatpush2.msra.mxu0 0.0
          %785 = vmatprep.subr.mxu0 0.0
          %786 = vmatpush2.msra.mxu0 0.0
          %787 = vmatprep.subr.mxu0 0.0
          %788 = vmatpush2.msra.mxu0 0.0
          %789 = vmatprep.subr.mxu0 0.0
          %790 = vmatpush2.msra.mxu0 0.0
          %791 = vmatprep.subr.mxu0 0.0
          %792 = vmatpush2.msra.mxu0 0.0
          %793 = vmatprep.subr.mxu0 0.0
          %794 = vmatpush2.msra.mxu0 0.0
          %795 = vmatprep.subr.mxu0 0.0
          %796 = vmatpush2.msra.mxu0 0.0
          %797 = vmatprep.subr.mxu0 0.0
          %798 = vmatpush2.msra.mxu0 0.0
          %799 = vmatprep.subr.mxu0 0.0
          %800 = vmatpush2.msra.mxu0 0.0
          %801 = vmatprep.subr.mxu0 0.0
          %802 = vmatpush2.msra.mxu0 0.0
          %803 = vmatprep.subr.mxu0 0.0
          %804 = vmatpush2.msra.mxu0 0.0
          %805 = vmatprep.subr.mxu0 0.0
          %806 = vmatpush2.msra.mxu0 0.0
          %807 = vmatprep.subr.mxu0 0.0
          %808 = vmatpush2.msra.mxu0 0.0
          %809 = vmatprep.subr.mxu0 0.0
          %810 = vmatpush2.msra.mxu0 0.0
          %811 = vmatprep.subr.mxu0 0.0
          %812 = vmatpush2.msra.mxu0 0.0
          %813 = vmatprep.mubr.f32.mxu0 0.0
          %814 = vmatmul.mubr.f32.gmra.mxu0 %v710
          %v815 = vpop.f32.mrf.mxu0
          %v816 = vadd.f32 %v747, %v815
          %v817 = vpop.f32.mrf.mxu0
          %818 = vmatprep.mubr.f32.mxu0 0.0
          %819 = vmatmul.mubr.f32.gmra.mxu0 %v711
          %v820 = vpop.f32.mrf.mxu0
          %v821 = vadd.f32 %v747, %v820
          %v822 = vpop.f32.mrf.mxu0
          %823 = vmatprep.mubr.f32.mxu0 0.0
          %824 = vmatmul.mubr.f32.gmra.mxu0 %v712
          %v825 = vpop.f32.mrf.mxu0
          %v826 = vadd.f32 %v747, %v825
          %v827 = vpop.f32.mrf.mxu0
          %828 = vmatprep.mubr.f32.mxu0 0.0
          %829 = vmatmul.mubr.f32.gmra.mxu0 %v713
          %v830 = vpop.f32.mrf.mxu0
          %v831 = vadd.f32 %v747, %v830
          %v832 = vpop.f32.mrf.mxu0
          %833 = vmatprep.mubr.f32.mxu0 0.0
          %834 = vmatmul.mubr.f32.gmra.mxu0 %v714
          %v835 = vpop.f32.mrf.mxu0
          %v836 = vadd.f32 %v747, %v835
          %v837 = vpop.f32.mrf.mxu0
          %838 = vmatprep.mubr.f32.mxu0 0.0
          %839 = vmatmul.mubr.f32.gmra.mxu0 %v715
          %v840 = vpop.f32.mrf.mxu0
          %v841 = vadd.f32 %v747, %v840
          %v842 = vpop.f32.mrf.mxu0
          %843 = vmatprep.mubr.f32.mxu0 0.0
          %844 = vmatmul.mubr.f32.gmra.mxu0 %v716
          %v845 = vpop.f32.mrf.mxu0
          %v846 = vadd.f32 %v747, %v845
          %v847 = vpop.f32.mrf.mxu0
          %848 = vmatprep.mubr.f32.mxu0 0.0
          %849 = vmatmul.mubr.f32.gmra.mxu0 %v717
          %v850 = vpop.f32.mrf.mxu0
          %v851 = vadd.f32 %v747, %v850
          %v852 = vpop.f32.mrf.mxu0
          %853 = vmatprep.mubr.f32.mxu0 0.0
          %854 = vmatmul.mubr.f32.gmra.mxu0 %v718
          %v855 = vpop.f32.mrf.mxu0
          %v856 = vadd.f32 %v747, %v855
          %v857 = vpop.f32.mrf.mxu0
          %858 = vmatprep.mubr.f32.mxu0 0.0
          %859 = vmatmul.mubr.f32.gmra.mxu0 %v719
          %v860 = vpop.f32.mrf.mxu0
          %v861 = vadd.f32 %v747, %v860
          %v862 = vpop.f32.mrf.mxu0
          %863 = vmatprep.mubr.f32.mxu0 0.0
          %864 = vmatmul.mubr.f32.gmra.mxu0 %v720
          %v865 = vpop.f32.mrf.mxu0
          %v866 = vadd.f32 %v747, %v865
          %v867 = vpop.f32.mrf.mxu0
          %868 = vmatprep.mubr.f32.mxu0 0.0
          %869 = vmatmul.mubr.f32.gmra.mxu0 %v721
          %v870 = vpop.f32.mrf.mxu0
          %v871 = vadd.f32 %v747, %v870
          %v872 = vpop.f32.mrf.mxu0
          %873 = vmatprep.mubr.f32.mxu0 0.0
          %874 = vmatmul.mubr.f32.gmra.mxu0 %v722
          %v875 = vpop.f32.mrf.mxu0
          %v876 = vadd.f32 %v747, %v875
          %v877 = vpop.f32.mrf.mxu0
          %878 = vmatprep.mubr.f32.mxu0 0.0
          %879 = vmatmul.mubr.f32.gmra.mxu0 %v723
          %v880 = vpop.f32.mrf.mxu0
          %v881 = vadd.f32 %v747, %v880
          %v882 = vpop.f32.mrf.mxu0
          %883 = vmatprep.mubr.f32.mxu0 0.0
          %884 = vmatmul.mubr.f32.gmra.mxu0 %v724
          %v885 = vpop.f32.mrf.mxu0
          %v886 = vadd.f32 %v747, %v885
          %v887 = vpop.f32.mrf.mxu0
          %888 = vmatprep.mubr.f32.mxu0 0.0
          %889 = vmatmul.mubr.f32.gmra.mxu0 %v725
          %v890 = vpop.f32.mrf.mxu0
          %v891 = vadd.f32 %v747, %v890
          %v892 = vpop.f32.mrf.mxu0
          %893 = vdwg.mxu0
          %v894 = vmax.f32 %v816, 0.0
          %v895 = vmax.f32 %v821, 0.0
          %v896 = vmax.f32 %v826, 0.0
          %v897 = vmax.f32 %v831, 0.0
          %v898 = vmax.f32 %v836, 0.0
          %v899 = vmax.f32 %v841, 0.0
          %v900 = vmax.f32 %v846, 0.0
          %v901 = vmax.f32 %v851, 0.0
          %v902 = vmax.f32 %v856, 0.0
          %v903 = vmax.f32 %v861, 0.0
          %v904 = vmax.f32 %v866, 0.0
          %v905 = vmax.f32 %v871, 0.0
          %v906 = vmax.f32 %v876, 0.0
          %v907 = vmax.f32 %v881, 0.0
          %v908 = vmax.f32 %v886, 0.0
          %v909 = vmax.f32 %v891, 0.0
          %v910 = vld [vmem:[%s5] sm:$0xff]
          %v911 = vld [vmem:[%s5 + $0x8] sm:$0xff]
          %v912 = vld [vmem:[%s5 + $0x10] sm:$0xff]
          %v913 = vld [vmem:[%s5 + $0x18] sm:$0xff]
          %v914 = vld [vmem:[%s5 + $0x20] sm:$0xff]
          %v915 = vld [vmem:[%s5 + $0x28] sm:$0xff]
          %v916 = vld [vmem:[%s5 + $0x30] sm:$0xff]
          %v917 = vld [vmem:[%s5 + $0x38] sm:$0xff]
          %v918 = vld [vmem:[%s5 + $0x40] sm:$0xff]
          %v919 = vld [vmem:[%s5 + $0x48] sm:$0xff]
          %v920 = vld [vmem:[%s5 + $0x50] sm:$0xff]
          %v921 = vld [vmem:[%s5 + $0x58] sm:$0xff]
          %v922 = vld [vmem:[%s5 + $0x60] sm:$0xff]
          %v923 = vld [vmem:[%s5 + $0x68] sm:$0xff]
          %v924 = vld [vmem:[%s5 + $0x70] sm:$0xff]
          %v925 = vld [vmem:[%s5 + $0x78] sm:$0xff]
          %v926 = vld [vmem:[%s6] sm:$0x1]
          %v928 = vlaneseq
          %v929 = vshrl.u32 %v928, 7
          %v930 = vsub.s32 0, %v929
          %v931 = vrot.slane %v926, %v930
          %933 = vmatprep.subr.mxu0 0.0
          %934 = vmatpush1.msra.mxu0 %v925
          %935 = vmatprep.subr.mxu0 0.0
          %936 = vmatpush1.msra.mxu0 %v924
          %937 = vmatprep.subr.mxu0 0.0
          %938 = vmatpush1.msra.mxu0 %v923
          %939 = vmatprep.subr.mxu0 0.0
          %940 = vmatpush1.msra.mxu0 %v922
          %941 = vmatprep.subr.mxu0 0.0
          %942 = vmatpush1.msra.mxu0 %v921
          %943 = vmatprep.subr.mxu0 0.0
          %944 = vmatpush1.msra.mxu0 %v920
          %945 = vmatprep.subr.mxu0 0.0
          %946 = vmatpush1.msra.mxu0 %v919
          %947 = vmatprep.subr.mxu0 0.0
          %948 = vmatpush1.msra.mxu0 %v918
          %949 = vmatprep.subr.mxu0 0.0
          %950 = vmatpush1.msra.mxu0 %v917
          %951 = vmatprep.subr.mxu0 0.0
          %952 = vmatpush1.msra.mxu0 %v916
          %953 = vmatprep.subr.mxu0 0.0
          %954 = vmatpush1.msra.mxu0 %v915
          %955 = vmatprep.subr.mxu0 0.0
          %956 = vmatpush1.msra.mxu0 %v914
          %957 = vmatprep.subr.mxu0 0.0
          %958 = vmatpush1.msra.mxu0 %v913
          %959 = vmatprep.subr.mxu0 0.0
          %960 = vmatpush1.msra.mxu0 %v912
          %961 = vmatprep.subr.mxu0 0.0
          %962 = vmatpush1.msra.mxu0 %v911
          %963 = vmatprep.subr.mxu0 0.0
          %964 = vmatpush1.msra.mxu0 %v910
          %965 = vmatprep.subr.mxu0 0.0
          %966 = vmatpush2.msra.mxu0 0.0
          %967 = vmatprep.subr.mxu0 0.0
          %968 = vmatpush2.msra.mxu0 0.0
          %969 = vmatprep.subr.mxu0 0.0
          %970 = vmatpush2.msra.mxu0 0.0
          %971 = vmatprep.subr.mxu0 0.0
          %972 = vmatpush2.msra.mxu0 0.0
          %973 = vmatprep.subr.mxu0 0.0
          %974 = vmatpush2.msra.mxu0 0.0
          %975 = vmatprep.subr.mxu0 0.0
          %976 = vmatpush2.msra.mxu0 0.0
          %977 = vmatprep.subr.mxu0 0.0
          %978 = vmatpush2.msra.mxu0 0.0
          %979 = vmatprep.subr.mxu0 0.0
          %980 = vmatpush2.msra.mxu0 0.0
          %981 = vmatprep.subr.mxu0 0.0
          %982 = vmatpush2.msra.mxu0 0.0
          %983 = vmatprep.subr.mxu0 0.0
          %984 = vmatpush2.msra.mxu0 0.0
          %985 = vmatprep.subr.mxu0 0.0
          %986 = vmatpush2.msra.mxu0 0.0
          %987 = vmatprep.subr.mxu0 0.0
          %988 = vmatpush2.msra.mxu0 0.0
          %989 = vmatprep.subr.mxu0 0.0
          %990 = vmatpush2.msra.mxu0 0.0
          %991 = vmatprep.subr.mxu0 0.0
          %992 = vmatpush2.msra.mxu0 0.0
          %993 = vmatprep.subr.mxu0 0.0
          %994 = vmatpush2.msra.mxu0 0.0
          %995 = vmatprep.subr.mxu0 0.0
          %996 = vmatpush2.msra.mxu0 0.0
          %997 = vmatprep.mubr.f32.mxu0 0.0
          %998 = vmatmul.mubr.f32.gmra.mxu0 %v894
          %v999 = vpop.f32.mrf.mxu0
          %v1000 = vadd.f32 %v931, %v999
          %v1001 = vpop.f32.mrf.mxu0
          %1002 = vmatprep.mubr.f32.mxu0 0.0
          %1003 = vmatmul.mubr.f32.gmra.mxu0 %v895
          %v1004 = vpop.f32.mrf.mxu0
          %v1005 = vadd.f32 %v931, %v1004
          %v1006 = vpop.f32.mrf.mxu0
          %1007 = vmatprep.mubr.f32.mxu0 0.0
          %1008 = vmatmul.mubr.f32.gmra.mxu0 %v896
          %v1009 = vpop.f32.mrf.mxu0
          %v1010 = vadd.f32 %v931, %v1009
          %v1011 = vpop.f32.mrf.mxu0
          %1012 = vmatprep.mubr.f32.mxu0 0.0
          %1013 = vmatmul.mubr.f32.gmra.mxu0 %v897
          %v1014 = vpop.f32.mrf.mxu0
          %v1015 = vadd.f32 %v931, %v1014
          %v1016 = vpop.f32.mrf.mxu0
          %1017 = vmatprep.mubr.f32.mxu0 0.0
          %1018 = vmatmul.mubr.f32.gmra.mxu0 %v898
          %v1019 = vpop.f32.mrf.mxu0
          %v1020 = vadd.f32 %v931, %v1019
          %v1021 = vpop.f32.mrf.mxu0
          %1022 = vmatprep.mubr.f32.mxu0 0.0
          %1023 = vmatmul.mubr.f32.gmra.mxu0 %v899
          %v1024 = vpop.f32.mrf.mxu0
          %v1025 = vadd.f32 %v931, %v1024
          %v1026 = vpop.f32.mrf.mxu0
          %1027 = vmatprep.mubr.f32.mxu0 0.0
          %1028 = vmatmul.mubr.f32.gmra.mxu0 %v900
          %v1029 = vpop.f32.mrf.mxu0
          %v1030 = vadd.f32 %v931, %v1029
          %v1031 = vpop.f32.mrf.mxu0
          %1032 = vmatprep.mubr.f32.mxu0 0.0
          %1033 = vmatmul.mubr.f32.gmra.mxu0 %v901
          %v1034 = vpop.f32.mrf.mxu0
          %v1035 = vadd.f32 %v931, %v1034
          %v1036 = vpop.f32.mrf.mxu0
          %1037 = vmatprep.mubr.f32.mxu0 0.0
          %1038 = vmatmul.mubr.f32.gmra.mxu0 %v902
          %v1039 = vpop.f32.mrf.mxu0
          %v1040 = vadd.f32 %v931, %v1039
          %v1041 = vpop.f32.mrf.mxu0
          %1042 = vmatprep.mubr.f32.mxu0 0.0
          %1043 = vmatmul.mubr.f32.gmra.mxu0 %v903
          %v1044 = vpop.f32.mrf.mxu0
          %v1045 = vadd.f32 %v931, %v1044
          %v1046 = vpop.f32.mrf.mxu0
          %1047 = vmatprep.mubr.f32.mxu0 0.0
          %1048 = vmatmul.mubr.f32.gmra.mxu0 %v904
          %v1049 = vpop.f32.mrf.mxu0
          %v1050 = vadd.f32 %v931, %v1049
          %v1051 = vpop.f32.mrf.mxu0
          %1052 = vmatprep.mubr.f32.mxu0 0.0
          %1053 = vmatmul.mubr.f32.gmra.mxu0 %v905
          %v1054 = vpop.f32.mrf.mxu0
          %v1055 = vadd.f32 %v931, %v1054
          %v1056 = vpop.f32.mrf.mxu0
          %1057 = vmatprep.mubr.f32.mxu0 0.0
          %1058 = vmatmul.mubr.f32.gmra.mxu0 %v906
          %v1059 = vpop.f32.mrf.mxu0
          %v1060 = vadd.f32 %v931, %v1059
          %v1061 = vpop.f32.mrf.mxu0
          %1062 = vmatprep.mubr.f32.mxu0 0.0
          %1063 = vmatmul.mubr.f32.gmra.mxu0 %v907
          %v1064 = vpop.f32.mrf.mxu0
          %v1065 = vadd.f32 %v931, %v1064
          %v1066 = vpop.f32.mrf.mxu0
          %1067 = vmatprep.mubr.f32.mxu0 0.0
          %1068 = vmatmul.mubr.f32.gmra.mxu0 %v908
          %v1069 = vpop.f32.mrf.mxu0
          %v1070 = vadd.f32 %v931, %v1069
          %v1071 = vpop.f32.mrf.mxu0
          %1072 = vmatprep.mubr.f32.mxu0 0.0
          %1073 = vmatmul.mubr.f32.gmra.mxu0 %v909
          %v1074 = vpop.f32.mrf.mxu0
          %v1075 = vadd.f32 %v931, %v1074
          %v1076 = vpop.f32.mrf.mxu0
          %1077 = vdwg.mxu0
          %v1078 = vmax.f32 %v1000, 0.0
          %v1079 = vmax.f32 %v1005, 0.0
          %v1080 = vmax.f32 %v1010, 0.0
          %v1081 = vmax.f32 %v1015, 0.0
          %v1082 = vmax.f32 %v1020, 0.0
          %v1083 = vmax.f32 %v1025, 0.0
          %v1084 = vmax.f32 %v1030, 0.0
          %v1085 = vmax.f32 %v1035, 0.0
          %v1086 = vmax.f32 %v1040, 0.0
          %v1087 = vmax.f32 %v1045, 0.0
          %v1088 = vmax.f32 %v1050, 0.0
          %v1089 = vmax.f32 %v1055, 0.0
          %v1090 = vmax.f32 %v1060, 0.0
          %v1091 = vmax.f32 %v1065, 0.0
          %v1092 = vmax.f32 %v1070, 0.0
          %v1093 = vmax.f32 %v1075, 0.0
          %v1094 = vld [vmem:[%s437] sm:$0xff]
          %v1095 = vld [vmem:[%s437 + $0x8] sm:$0xff]
          %v1096 = vld [vmem:[%s437 + $0x10] sm:$0xff]
          %v1097 = vld [vmem:[%s437 + $0x18] sm:$0xff]
          %v1098 = vld [vmem:[%s437 + $0x20] sm:$0xff]
          %v1099 = vld [vmem:[%s437 + $0x28] sm:$0xff]
          %v1100 = vld [vmem:[%s437 + $0x30] sm:$0xff]
          %v1101 = vld [vmem:[%s437 + $0x38] sm:$0xff]
          %v1102 = vld [vmem:[%s437 + $0x40] sm:$0xff]
          %v1103 = vld [vmem:[%s437 + $0x48] sm:$0xff]
          %v1104 = vld [vmem:[%s437 + $0x50] sm:$0xff]
          %v1105 = vld [vmem:[%s437 + $0x58] sm:$0xff]
          %v1106 = vld [vmem:[%s437 + $0x60] sm:$0xff]
          %v1107 = vld [vmem:[%s437 + $0x68] sm:$0xff]
          %v1108 = vld [vmem:[%s437 + $0x70] sm:$0xff]
          %v1109 = vld [vmem:[%s437 + $0x78] sm:$0xff]
          %v1110 = vadd.f32 %v1078, %v1094
          %v1111 = vadd.f32 %v1079, %v1095
          %v1112 = vadd.f32 %v1080, %v1096
          %v1113 = vadd.f32 %v1081, %v1097
          %v1114 = vadd.f32 %v1082, %v1098
          %v1115 = vadd.f32 %v1083, %v1099
          %v1116 = vadd.f32 %v1084, %v1100
          %v1117 = vadd.f32 %v1085, %v1101
          %v1118 = vadd.f32 %v1086, %v1102
          %v1119 = vadd.f32 %v1087, %v1103
          %v1120 = vadd.f32 %v1088, %v1104
          %v1121 = vadd.f32 %v1089, %v1105
          %v1122 = vadd.f32 %v1090, %v1106
          %v1123 = vadd.f32 %v1091, %v1107
          %v1124 = vadd.f32 %v1092, %v1108
          %v1125 = vadd.f32 %v1093, %v1109
          %1126 = vst [vmem:[%s443] sm:$0xff] %v1110
          %1127 = vst [vmem:[%s443 + $0x8] sm:$0xff] %v1111
          %1128 = vst [vmem:[%s443 + $0x10] sm:$0xff] %v1112
          %1129 = vst [vmem:[%s443 + $0x18] sm:$0xff] %v1113
          %1130 = vst [vmem:[%s443 + $0x20] sm:$0xff] %v1114
          %1131 = vst [vmem:[%s443 + $0x28] sm:$0xff] %v1115
          %1132 = vst [vmem:[%s443 + $0x30] sm:$0xff] %v1116
          %1133 = vst [vmem:[%s443 + $0x38] sm:$0xff] %v1117
          %1134 = vst [vmem:[%s443 + $0x40] sm:$0xff] %v1118
          %1135 = vst [vmem:[%s443 + $0x48] sm:$0xff] %v1119
          %1136 = vst [vmem:[%s443 + $0x50] sm:$0xff] %v1120
          %1137 = vst [vmem:[%s443 + $0x58] sm:$0xff] %v1121
          %1138 = vst [vmem:[%s443 + $0x60] sm:$0xff] %v1122
          %1139 = vst [vmem:[%s443 + $0x68] sm:$0xff] %v1123
          %1140 = vst [vmem:[%s443 + $0x70] sm:$0xff] %v1124
          %1141 = vst [vmem:[%s443 + $0x78] sm:$0xff] %v1125
        $region97: #{gcn_layer_forward.3} parent=84 // pred_fallthru
          _
        %s1142 = smul.u32 16, %s22
        %p1143 = scmp.lt.s32.totalorder %s1142, 31
        %s1144 = scalar_select %p1143, %s1142, 31
        %s1145 = smul.addr %s1144, 8
        %s1146 = scalar_lea.vmem %s7, %s1145
        // Predicated region
        $region98: #{gcn_layer_forward.3} parent=84 // pred_check
          %p1147 = pneg %p212
        $region99: #{gcn_layer_forward.3} parent=84 // pred_check_branch
          %1149 = sbr.rel (%p1147) target = $region101
        $region100: #{gcn_layer_forward.3} parent=84 // pred_region
          %s1150 = smul.u32 16, %s22
        $region101: #{gcn_layer_forward.3} parent=84 // pred_fallthru
          _
      $region85: #{gcn_layer_forward.3} parent=5 // pred_fallthru
        _
      %p1151 = scmp.le.s32.totalorder 2, %s13
      // Predicated region
      $region102: #{gcn_layer_forward.3} parent=5 // pred_check
        %p1152 = pneg %p1151
      $region103: #{gcn_layer_forward.3} parent=5 // pred_check_branch
        %1154 = sbr.rel (%p1152) target = $region105
      $region104: #{gcn_layer_forward.3} parent=5 // pred_region
        %s1155 = ssub.s32 %s13, 2
        // Predicated region
        $region106: #{gcn_layer_forward.3} parent=104 // pred_check
          %p1156 = pneg %p218
        $region107: #{gcn_layer_forward.3} parent=104 // pred_check_branch
          %1158 = sbr.rel (%p1156) target = $region109
        $region108: #{gcn_layer_forward.3} parent=104 // pred_region
          %s1159 = smul.u32 16, %s24
          %p1160 = scmp.lt.s32.totalorder %s1159, 31
          %s1161 = scalar_select %p1160, %s1159, 31
          %s1162 = smul.addr %s1161, 8
          %s1163 = scalar_lea.vmem %s7, %s1162
        $region109: #{gcn_layer_forward.3} parent=104 // pred_fallthru
          _
      $region105: #{gcn_layer_forward.3} parent=5 // pred_fallthru
        _
    $region6: #{gcn_layer_forward.3} parent=1 // loop_footer
      %s17 = sadd.s32 1, %s13
    $region7: #{gcn_layer_forward.3} parent=1 // loop_footer_branch
      %12 = sbr.rel target = $region3
    $region8: #{gcn_layer_forward.3} parent=1 // loop_exit
      _

</llo_original>
